<compile_context>
chip_gen: v7x
topology: tpu7x:2x2x1
jax: 0.10.0
libtpu: 0.0.40
codegen_flags: <defaults>
</compile_context>

<pallas_src>
import jax
import jax.numpy as jnp
from jax.experimental import pallas as pl
from jax.experimental.pallas import tpu as pltpu

VIME_BETA = 0.1
HEAD_PAD = 128            # each head (mean / log_var) padded to 128 lanes
ENC1, ENC2 = 256, 128     # encoder widths


def _vime_kernel(x_ref, w1_ref, b1_ref, wf_ref, bf_ref, out_ref):
    # Layer 1: (tb, S+A) bf16 @ (S+A, 256) bf16 -> f32, + bias, ReLU.
    h1 = jnp.dot(x_ref[...], w1_ref[...],
                 preferred_element_type=jnp.float32) + b1_ref[...]
    h1 = jnp.maximum(h1, 0.0)

    # Fused layer-2 + heads: (tb, 256) bf16 @ (256, 256) bf16 -> f32.
    # Columns [0,128) = mean, [128,256) = log_var, both zero-padded beyond S.
    y = jnp.dot(h1.astype(jnp.bfloat16), wf_ref[...],
                preferred_element_type=jnp.float32) + bf_ref[...]
    mean = y[:, :HEAD_PAD]
    log_var = jnp.clip(y[:, HEAD_PAD:], -20.0, 2.0)

    # Per-column KL term; padded columns are exactly 0 (1 + 0 - 0 - exp(0)).
    term = 1.0 + log_var - mean * mean - jnp.exp(log_var)        # (tb, 128) f32

    # Row reduction via MXU matvec (K=128 fully filled) -> (tb, 1).
    ones_col = jnp.ones((HEAD_PAD, 1), jnp.float32)
    kl = jnp.dot(term, ones_col, preferred_element_type=jnp.float32)
    out_ref[...] = (-0.5 * VIME_BETA) * kl                       # (tb, 1)


def _round_up(x, m):
    return -(-x // m) * m


def _default_tb(batch):
    """Batch-aware tile: 1 step for small B, 2 steps (v7x both TCs) for
    moderate B, cap at 2048 rows/step for huge B."""
    b128 = _round_up(batch, 128)
    if b128 <= 1024:
        return b128
    if b128 <= 4096:
        return _round_up(-(-b128 // 2), 128)
    return 2048


def vime_forward(state, action, next_state, kernel_params, *, tb=None):
    """Pallas implementation of VIME.forward. Returns intrinsic_reward (B,)."""
    del next_state  # unused in the reference forward pass

    B, S = state.shape
    A = action.shape[1]
    K = S + A

    if tb is None:
        tb = _default_tb(B)
    assert tb % 128 == 0, "batch tile must be a multiple of 128"

    # Single fused input, cast once to bf16 (matches matmul input precision).
    x = jnp.concatenate([state.astype(jnp.float32),
                         action.astype(jnp.float32)],
                        axis=-1).astype(jnp.bfloat16)            # (B, S+A)

    num_tiles = pl.cdiv(B, tb)
    b_pad = num_tiles * tb
    if b_pad != B:
        x = jnp.pad(x, ((0, b_pad - B), (0, 0)))

    w1, b1, wf, bf = kernel_params

    def resident(arr):
        # Full-array block, constant index_map -> stays VMEM-resident.
        return pl.BlockSpec(arr.shape, lambda i: (0, 0))

    cost = pl.CostEstimate(
        flops=2 * b_pad * (K * ENC1 + ENC1 * 2 * HEAD_PAD + HEAD_PAD),
        transcendentals=b_pad * HEAD_PAD,
        bytes_accessed=(x.size * 2
                        + sum(int(p.size) * p.dtype.itemsize
                              for p in (w1, b1, wf, bf))
                        + b_pad * 4),
    )

    out = pl.pallas_call(
        _vime_kernel,
        out_shape=jax.ShapeDtypeStruct((b_pad, 1), jnp.float32),
        grid=(num_tiles,),
        in_specs=[
            pl.BlockSpec((tb, K), lambda i: (i, 0)),   # fused [state|action] tile
            resident(w1), resident(b1),
            resident(wf), resident(bf),
        ],
        out_specs=pl.BlockSpec((tb, 1), lambda i: (i, 0)),
        compiler_params=pltpu.CompilerParams(
            dimension_semantics=("parallel",)),
        cost_estimate=cost,
    )(x, w1, b1, wf, bf)
    return out[:B, 0]


def init_vime_params(state_dim, action_dim, key):
    """Canonical f32 parameters, PyTorch-style uniform init, (in, out) layout."""
    dims = [
        (state_dim + action_dim, ENC1),  # encoder layer 1
        (ENC1, ENC2),                    # encoder layer 2
        (ENC2, state_dim),               # mean head
        (ENC2, state_dim),               # log_var head
    ]
    params = []
    for fan_in, fan_out in dims:
        key, kw, kb = jax.random.split(key, 3)
        bound = 1.0 / jnp.sqrt(fan_in)
        w = jax.random.uniform(kw, (fan_in, fan_out), jnp.float32, -bound, bound)
        b = jax.random.uniform(kb, (1, fan_out), jnp.float32, -bound, bound)
        params.extend([w, b])
    return tuple(params)


def prepare_kernel_params(params, state_dim):
    """Fuse layer-2 with the zero-padded heads, cast matmul weights to bf16."""
    w1, b1, w2, b2, wm, bm, wl, bl = params
    S = state_dim
    assert S <= HEAD_PAD, "state_dim must fit inside one 128-lane head slot"

    # Zero-padded fused head weights (mean in cols [0,128), log_var in [128,256)).
    wh = jnp.zeros((ENC2, 2 * HEAD_PAD), jnp.float32)
    wh = wh.at[:, :S].set(wm).at[:, HEAD_PAD:HEAD_PAD + S].set(wl)
    bh = jnp.zeros((1, 2 * HEAD_PAD), jnp.float32)
    bh = bh.at[:, :S].set(bm).at[:, HEAD_PAD:HEAD_PAD + S].set(bl)

    # Fuse layer 2 into the heads (no activation between them).
    wf = jnp.dot(w2, wh).astype(jnp.bfloat16)            # (256, 256)
    bf = (jnp.dot(b2, wh) + bh).astype(jnp.float32)      # (1, 256)

    return (w1.astype(jnp.bfloat16), b1.astype(jnp.float32), wf, bf)


def vime_reference(state, action, next_state, params):
    """Plain-JAX f32 reference mirroring the PyTorch forward exactly."""
    del next_state
    w1, b1, w2, b2, wm, bm, wl, bl = params
    x = jnp.concatenate([state, action], axis=-1).astype(jnp.float32)
    h = jnp.maximum(jnp.dot(x, w1) + b1, 0.0)
    h = jnp.dot(h, w2) + b2
    mean = jnp.dot(h, wm) + bm
    log_var = jnp.clip(jnp.dot(h, wl) + bl, -20.0, 2.0)
    kl = -0.5 * jnp.sum(1.0 + log_var - mean**2 - jnp.exp(log_var), axis=-1)
    return VIME_BETA * kl


if __name__ == "__main__":
    # Hopper-v2-like dims: state_dim=11, action_dim=3.
    # batch=300 exercises batch padding (tb auto-selects 384 -> single step).
    state_dim, action_dim, batch = 11, 3, 300

    key = jax.random.PRNGKey(0)
    kp, ks, ka, kn = jax.random.split(key, 4)

    params = init_vime_params(state_dim, action_dim, kp)
    kparams = prepare_kernel_params(params, state_dim)

    state = jax.random.normal(ks, (batch, state_dim), jnp.float32)
    action = jax.random.normal(ka, (batch, action_dim), jnp.float32)
    next_state = jax.random.normal(kn, (batch, state_dim), jnp.float32)

    reward = vime_forward(state, action, next_state, kparams)
    jax.block_until_ready(reward)

    ref = vime_reference(state, action, next_state, params)
    assert reward.shape == (batch,)
    assert jnp.all(jnp.isfinite(reward))
    assert jnp.allclose(reward, ref, atol=2e-3, rtol=2e-2), (reward, ref)

    print("KERNEL_OK")
</pallas_src>

<mosaic_0001>
module attributes {stable_mosaic.version = 11 : i64} {
  func.func @_vime_kernel(%arg0: i32, %arg1: memref<384x14xbf16, #tpu.memory_space<vmem>>, %arg2: memref<14x256xbf16, #tpu.memory_space<vmem>>, %arg3: memref<1x256xf32, #tpu.memory_space<vmem>>, %arg4: memref<256x256xbf16, #tpu.memory_space<vmem>>, %arg5: memref<1x256xf32, #tpu.memory_space<vmem>>, %arg6: memref<384x1xf32, #tpu.memory_space<vmem>>) attributes {dimension_semantics = [#tpu.dimension_semantics<parallel>], iteration_bounds = array<i64: 1>, scalar_prefetch = 0 : i64, scratch_operands = 0 : i64, tpu.core_type = #tpu.core_type<tc>, window_params = [{transform_indices = @transform_0, window_bounds = array<i64: 384, 14>}, {pipeline_mode = #tpu.pipeline_mode<synchronous>, transform_indices = @transform_1, window_bounds = array<i64: 14, 256>}, {pipeline_mode = #tpu.pipeline_mode<synchronous>, transform_indices = @transform_2, window_bounds = array<i64: 1, 256>}, {pipeline_mode = #tpu.pipeline_mode<synchronous>, transform_indices = @transform_3, window_bounds = array<i64: 256, 256>}, {pipeline_mode = #tpu.pipeline_mode<synchronous>, transform_indices = @transform_4, window_bounds = array<i64: 1, 256>}, {transform_indices = @transform_5, window_bounds = array<i64: 384, 1>}]} {
    %c0 = arith.constant 0 : index
    %c0_0 = arith.constant 0 : index
    %0 = vector.load %arg1[%c0, %c0_0] : memref<384x14xbf16, #tpu.memory_space<vmem>>, vector<384x14xbf16>
    %c0_1 = arith.constant 0 : index
    %c0_2 = arith.constant 0 : index
    %1 = vector.load %arg2[%c0_1, %c0_2] : memref<14x256xbf16, #tpu.memory_space<vmem>>, vector<14x256xbf16>
    %cst = arith.constant dense<0.000000e+00> : vector<384x256xf32>
    %2 = tpu.matmul %0, %1, %cst {dimension_numbers = #tpu.dot_dimension_numbers<[1], [0], [0], [1], [0, 0, 1, 1], [], []>} : vector<384x14xbf16>, vector<14x256xbf16>, vector<384x256xf32> -> vector<384x256xf32>
    %c0_3 = arith.constant 0 : index
    %c0_4 = arith.constant 0 : index
    %3 = vector.load %arg3[%c0_3, %c0_4] : memref<1x256xf32, #tpu.memory_space<vmem>>, vector<1x256xf32>
    %4 = vector.broadcast %3 : vector<1x256xf32> to vector<384x256xf32>
    %5 = arith.addf %2, %4 : vector<384x256xf32>
    %cst_5 = arith.constant 0.000000e+00 : f32
    %6 = vector.broadcast %cst_5 : f32 to vector<384x256xf32>
    %7 = arith.maximumf %5, %6 : vector<384x256xf32>
    %8 = arith.truncf %7 : vector<384x256xf32> to vector<384x256xbf16>
    %c0_6 = arith.constant 0 : index
    %c0_7 = arith.constant 0 : index
    %9 = vector.load %arg4[%c0_6, %c0_7] : memref<256x256xbf16, #tpu.memory_space<vmem>>, vector<256x256xbf16>
    %cst_8 = arith.constant dense<0.000000e+00> : vector<384x256xf32>
    %10 = tpu.matmul %8, %9, %cst_8 {dimension_numbers = #tpu.dot_dimension_numbers<[1], [0], [0], [1], [0, 0, 1, 1], [], []>} : vector<384x256xbf16>, vector<256x256xbf16>, vector<384x256xf32> -> vector<384x256xf32>
    %c0_9 = arith.constant 0 : index
    %c0_10 = arith.constant 0 : index
    %11 = vector.load %arg5[%c0_9, %c0_10] : memref<1x256xf32, #tpu.memory_space<vmem>>, vector<1x256xf32>
    %12 = vector.broadcast %11 : vector<1x256xf32> to vector<384x256xf32>
    %13 = arith.addf %10, %12 : vector<384x256xf32>
    %14 = vector.extract_strided_slice %13 {offsets = [0, 0], sizes = [384, 128], strides = [1, 1]} : vector<384x256xf32> to vector<384x128xf32>
    %15 = vector.extract_strided_slice %13 {offsets = [0, 128], sizes = [384, 128], strides = [1, 1]} : vector<384x256xf32> to vector<384x128xf32>
    %cst_11 = arith.constant -2.000000e+01 : f32
    %cst_12 = arith.constant 2.000000e+00 : f32
    %16 = vector.broadcast %cst_11 : f32 to vector<384x128xf32>
    %17 = arith.maximumf %16, %15 : vector<384x128xf32>
    %18 = vector.broadcast %cst_12 : f32 to vector<384x128xf32>
    %19 = arith.minimumf %18, %17 : vector<384x128xf32>
    %cst_13 = arith.constant 1.000000e+00 : f32
    %20 = vector.broadcast %cst_13 : f32 to vector<384x128xf32>
    %21 = arith.addf %20, %19 : vector<384x128xf32>
    %22 = arith.mulf %14, %14 : vector<384x128xf32>
    %23 = arith.subf %21, %22 : vector<384x128xf32>
    %24 = math.exp %19 : vector<384x128xf32>
    %25 = arith.subf %23, %24 : vector<384x128xf32>
    %cst_14 = arith.constant 1.000000e+00 : f32
    %26 = vector.broadcast %cst_14 : f32 to vector<128x1xf32>
    %cst_15 = arith.constant dense<0.000000e+00> : vector<384x1xf32>
    %27 = tpu.matmul %25, %26, %cst_15 {dimension_numbers = #tpu.dot_dimension_numbers<[1], [0], [0], [1], [0, 0, 1, 1], [], []>} : vector<384x128xf32>, vector<128x1xf32>, vector<384x1xf32> -> vector<384x1xf32>
    %cst_16 = arith.constant -5.000000e-02 : f32
    %28 = vector.broadcast %cst_16 : f32 to vector<384x1xf32>
    %29 = arith.mulf %28, %27 : vector<384x1xf32>
    %c0_17 = arith.constant 0 : index
    %c0_18 = arith.constant 0 : index
    %30 = vector.load %arg6[%c0_17, %c0_18] : memref<384x1xf32, #tpu.memory_space<vmem>>, vector<384x1xf32>
    tpu.vector_store %arg6[%c0_17, %c0_18], %29 {strides = array<i32>} : memref<384x1xf32, #tpu.memory_space<vmem>>, vector<384x1xf32>,
    return
  }
  func.func @transform_0(%arg0: i32) -> (i32, i32) {
    %c0_i32 = arith.constant 0 : i32
    %c0_i32_0 = arith.constant 0 : i32
    return %arg0, %c0_i32 : i32, i32
  }
  func.func @transform_1(%arg0: i32) -> (i32, i32) {
    %c0_i32 = arith.constant 0 : i32
    %c0_i32_0 = arith.constant 0 : i32
    %c0_i32_1 = arith.constant 0 : i32
    return %c0_i32, %c0_i32_0 : i32, i32
  }
  func.func @transform_2(%arg0: i32) -> (i32, i32) {
    %c0_i32 = arith.constant 0 : i32
    %c0_i32_0 = arith.constant 0 : i32
    %c0_i32_1 = arith.constant 0 : i32
    return %c0_i32, %c0_i32_0 : i32, i32
  }
  func.func @transform_3(%arg0: i32) -> (i32, i32) {
    %c0_i32 = arith.constant 0 : i32
    %c0_i32_0 = arith.constant 0 : i32
    %c0_i32_1 = arith.constant 0 : i32
    return %c0_i32, %c0_i32_0 : i32, i32
  }
  func.func @transform_4(%arg0: i32) -> (i32, i32) {
    %c0_i32 = arith.constant 0 : i32
    %c0_i32_0 = arith.constant 0 : i32
    %c0_i32_1 = arith.constant 0 : i32
    return %c0_i32, %c0_i32_0 : i32, i32
  }
  func.func @transform_5(%arg0: i32) -> (i32, i32) {
    %c0_i32 = arith.constant 0 : i32
    %c0_i32_0 = arith.constant 0 : i32
    return %arg0, %c0_i32 : i32, i32
  }
}

</mosaic_0001>

<llo_original>
// kernel: tpu_custom_call.1
$region0: #{tpu_custom_call.1}
  #allocation0 [shape = 'u32[]', space=smem, size = 0x4, offset = 0x4, fixed_abs, tag = 'smem constant byte address 0x4 - core index']
  #allocation1 [shape = 'u32[144,128]{1,0:T(1,128)}', space=vmem, size = 0x12000, scoped, tag = 'internal scratch']
  %s0 = inlined_call_operand.vmem [shape: bf16[384,14], index: 0, kind: input, shape index: {}]
  %s1 = inlined_call_operand.vmem [shape: bf16[14,256], index: 1, kind: input, shape index: {}]
  %s2 = inlined_call_operand.vmem [shape: f32[1,256], index: 2, kind: input, shape index: {}]
  %s3 = inlined_call_operand.hbm [shape: bf16[256,256], index: 3, kind: input, shape index: {}]
  %s4 = inlined_call_operand.vmem [shape: f32[1,256], index: 4, kind: input, shape index: {}]
  %s5 = inlined_call_operand.vmem [shape: f32[384,1], index: 5, kind: output, shape index: {}]
  %s6 = sld [smem:[#allocation0]]
  $region34: #{tpu_custom_call.1} parent=0
    _
  %s8 = ssub.s32 1, %s6
  %s9 = scalar_select 0, %s8, %s6
  $region1: #{tpu_custom_call.1} parent=0
    #allocation2 [shape = 'u8[131072]{0}', space=vmem, size = 0x20000, scoped, tag = 'input window, operand 3, single buffered']
    #allocation3 [shape = 's32[1]{0}', space=sflag, size = 0x4, scoped, tag = 'scoped memory for tpu_custom_call.1']
    %10 = vsyncpa [#allocation3], 0
    // Predicated region
    $region2: #{tpu_custom_call.1} parent=1 // pred_check
      _
    $region3: #{tpu_custom_call.1} parent=1 // pred_check_branch
      %12 = sbr.rel (0) target = $region5
    $region4: #{tpu_custom_call.1} parent=1 // pred_region
      _
    $region5: #{tpu_custom_call.1} parent=1 // pred_fallthru
      _
    // Predicated region
    $region6: #{tpu_custom_call.1} parent=1 // pred_check
      _
    $region7: #{tpu_custom_call.1} parent=1 // pred_check_branch
      %14 = sbr.rel (0) target = $region9
    $region8: #{tpu_custom_call.1} parent=1 // pred_region
      _
    $region9: #{tpu_custom_call.1} parent=1 // pred_fallthru
      _
    // Predicated region
    $region10: #{tpu_custom_call.1} parent=1 // pred_check
      _
    $region11: #{tpu_custom_call.1} parent=1 // pred_check_branch
      %16 = sbr.rel (0) target = $region13
    $region12: #{tpu_custom_call.1} parent=1 // pred_region
      _
    $region13: #{tpu_custom_call.1} parent=1 // pred_fallthru
      _
    // Predicated region
    $region14: #{tpu_custom_call.1} parent=1 // pred_check
      _
    $region15: #{tpu_custom_call.1} parent=1 // pred_check_branch
      %18 = sbr.rel (0) target = $region17
    $region16: #{tpu_custom_call.1} parent=1 // pred_region
      %s20 = ssub.s32 4096, 4096
      %21 = vsyncadd [#allocation3], %s20
      %s22 = sshll.u32 [#allocation2], 4
      %s23 = int_to_ptr.vmem [resolvable:$true] %s22
      %28 = dma.hbm_to_vmem [thread:$0]  %s3, 4096, %s23, [#allocation3], 128, 128, 8
    $region17: #{tpu_custom_call.1} parent=1 // pred_fallthru
      _
    // Predicated region
    $region18: #{tpu_custom_call.1} parent=1 // pred_check
      _
    $region19: #{tpu_custom_call.1} parent=1 // pred_check_branch
      %30 = sbr.rel (0) target = $region21
    $region20: #{tpu_custom_call.1} parent=1 // pred_region
      _
    $region21: #{tpu_custom_call.1} parent=1 // pred_fallthru
      _
    // Predicated region
    $region22: #{tpu_custom_call.1} parent=1 // pred_check
      _
    $region23: #{tpu_custom_call.1} parent=1 // pred_check_branch
      %32 = sbr.rel (0) target = $region25
    $region24: #{tpu_custom_call.1} parent=1 // pred_region
      %33 = dma.done [#allocation3], 4096
    $region25: #{tpu_custom_call.1} parent=1 // pred_fallthru
      _
    %v35 = vld [vmem:[%s0] sm:$0xf]
    %v36 = vld [vmem:[%s0 + $0x4] sm:$0xf]
    %v37 = vld [vmem:[%s0 + $0x8] sm:$0xf]
    %v38 = vld [vmem:[%s0 + $0xc] sm:$0xf]
    %v39 = vld [vmem:[%s0 + $0x10] sm:$0xf]
    %v40 = vld [vmem:[%s0 + $0x14] sm:$0xf]
    %v41 = vld [vmem:[%s0 + $0x18] sm:$0xf]
    %v42 = vld [vmem:[%s0 + $0x1c] sm:$0xf]
    %v43 = vld [vmem:[%s0 + $0x20] sm:$0xf]
    %v44 = vld [vmem:[%s0 + $0x24] sm:$0xf]
    %v45 = vld [vmem:[%s0 + $0x28] sm:$0xf]
    %v46 = vld [vmem:[%s0 + $0x2c] sm:$0xf]
    %v47 = vld [vmem:[%s0 + $0x30] sm:$0xf]
    %v48 = vld [vmem:[%s0 + $0x34] sm:$0xf]
    %v49 = vld [vmem:[%s0 + $0x38] sm:$0xf]
    %v50 = vld [vmem:[%s0 + $0x3c] sm:$0xf]
    %v51 = vld [vmem:[%s0 + $0x40] sm:$0xf]
    %v52 = vld [vmem:[%s0 + $0x44] sm:$0xf]
    %v53 = vld [vmem:[%s0 + $0x48] sm:$0xf]
    %v54 = vld [vmem:[%s0 + $0x4c] sm:$0xf]
    %v55 = vld [vmem:[%s0 + $0x50] sm:$0xf]
    %v56 = vld [vmem:[%s0 + $0x54] sm:$0xf]
    %v57 = vld [vmem:[%s0 + $0x58] sm:$0xf]
    %v58 = vld [vmem:[%s0 + $0x5c] sm:$0xf]
    %v59 = vld [vmem:[%s0 + $0x60] sm:$0xf]
    %v60 = vld [vmem:[%s0 + $0x64] sm:$0xf]
    %v61 = vld [vmem:[%s0 + $0x68] sm:$0xf]
    %v62 = vld [vmem:[%s0 + $0x6c] sm:$0xf]
    %v63 = vld [vmem:[%s0 + $0x70] sm:$0xf]
    %v64 = vld [vmem:[%s0 + $0x74] sm:$0xf]
    %v65 = vld [vmem:[%s0 + $0x78] sm:$0xf]
    %v66 = vld [vmem:[%s0 + $0x7c] sm:$0xf]
    %v67 = vld [vmem:[%s0 + $0x80] sm:$0xf]
    %v68 = vld [vmem:[%s0 + $0x84] sm:$0xf]
    %v69 = vld [vmem:[%s0 + $0x88] sm:$0xf]
    %v70 = vld [vmem:[%s0 + $0x8c] sm:$0xf]
    %v71 = vld [vmem:[%s0 + $0x90] sm:$0xf]
    %v72 = vld [vmem:[%s0 + $0x94] sm:$0xf]
    %v73 = vld [vmem:[%s0 + $0x98] sm:$0xf]
    %v74 = vld [vmem:[%s0 + $0x9c] sm:$0xf]
    %v75 = vld [vmem:[%s0 + $0xa0] sm:$0xf]
    %v76 = vld [vmem:[%s0 + $0xa4] sm:$0xf]
    %v77 = vld [vmem:[%s0 + $0xa8] sm:$0xf]
    %v78 = vld [vmem:[%s0 + $0xac] sm:$0xf]
    %v79 = vld [vmem:[%s0 + $0xb0] sm:$0xf]
    %v80 = vld [vmem:[%s0 + $0xb4] sm:$0xf]
    %v81 = vld [vmem:[%s0 + $0xb8] sm:$0xf]
    %v82 = vld [vmem:[%s0 + $0xbc] sm:$0xf]
    %v83 = vld [vmem:[%s1] sm:$0xff]
    %v84 = vld [vmem:[%s1 + $0x8] sm:$0x77]
    %v85 = vld [vmem:[%s2] sm:$0x3]
    %v87 = vlaneseq
    %v88 = vshrl.u32 %v87, 7
    %v89 = vsub.s32 0, %v88
    %v90 = vrot.slane %v85, %v89
    %v91 = vlaneseq
    %v92 = vshrl.u32 %v91, 7
    %v93 = vsub.s32 1, %v92
    %v94 = vrot.slane %v85, %v93
    %v145 = vunpack.c.l.b16 %v35
    %v146 = vunpack.c.l.b16 %v36
    %v147 = vunpack.c.l.b16 %v37
    %v148 = vunpack.c.l.b16 %v38
    %v149 = vunpack.c.l.b16 %v39
    %v150 = vunpack.c.l.b16 %v40
    %v151 = vunpack.c.l.b16 %v41
    %v152 = vunpack.c.l.b16 %v42
    %v153 = vunpack.c.l.b16 %v43
    %v154 = vunpack.c.l.b16 %v44
    %v155 = vunpack.c.l.b16 %v45
    %v156 = vunpack.c.l.b16 %v46
    %v157 = vunpack.c.l.b16 %v47
    %v158 = vunpack.c.l.b16 %v48
    %v159 = vunpack.c.l.b16 %v49
    %v160 = vunpack.c.l.b16 %v50
    %v161 = vunpack.c.l.b16 %v51
    %v162 = vunpack.c.l.b16 %v52
    %v163 = vunpack.c.l.b16 %v53
    %v164 = vunpack.c.l.b16 %v54
    %v165 = vunpack.c.l.b16 %v55
    %v166 = vunpack.c.l.b16 %v56
    %v167 = vunpack.c.l.b16 %v57
    %v168 = vunpack.c.l.b16 %v58
    %v169 = vunpack.c.l.b16 %v59
    %v170 = vunpack.c.l.b16 %v60
    %v171 = vunpack.c.l.b16 %v61
    %v172 = vunpack.c.l.b16 %v62
    %v173 = vunpack.c.l.b16 %v63
    %v174 = vunpack.c.l.b16 %v64
    %v175 = vunpack.c.l.b16 %v65
    %v176 = vunpack.c.l.b16 %v66
    %v177 = vunpack.c.l.b16 %v67
    %v178 = vunpack.c.l.b16 %v68
    %v179 = vunpack.c.l.b16 %v69
    %v180 = vunpack.c.l.b16 %v70
    %v181 = vunpack.c.l.b16 %v71
    %v182 = vunpack.c.l.b16 %v72
    %v183 = vunpack.c.l.b16 %v73
    %v184 = vunpack.c.l.b16 %v74
    %v185 = vunpack.c.l.b16 %v75
    %v186 = vunpack.c.l.b16 %v76
    %v187 = vunpack.c.l.b16 %v77
    %v188 = vunpack.c.l.b16 %v78
    %v189 = vunpack.c.l.b16 %v79
    %v190 = vunpack.c.l.b16 %v80
    %v191 = vunpack.c.l.b16 %v81
    %v192 = vunpack.c.l.b16 %v82
    %v193 = vpack.c.b16 %v146, %v145
    %v194 = vpack.c.b16 %v148, %v147
    %v195 = vpack.c.b16 %v150, %v149
    %v196 = vpack.c.b16 %v152, %v151
    %v197 = vpack.c.b16 %v154, %v153
    %v198 = vpack.c.b16 %v156, %v155
    %v199 = vpack.c.b16 %v158, %v157
    %v200 = vpack.c.b16 %v160, %v159
    %v201 = vpack.c.b16 %v162, %v161
    %v202 = vpack.c.b16 %v164, %v163
    %v203 = vpack.c.b16 %v166, %v165
    %v204 = vpack.c.b16 %v168, %v167
    %v205 = vpack.c.b16 %v170, %v169
    %v206 = vpack.c.b16 %v172, %v171
    %v207 = vpack.c.b16 %v174, %v173
    %v208 = vpack.c.b16 %v176, %v175
    %v209 = vpack.c.b16 %v178, %v177
    %v210 = vpack.c.b16 %v180, %v179
    %v211 = vpack.c.b16 %v182, %v181
    %v212 = vpack.c.b16 %v184, %v183
    %v213 = vpack.c.b16 %v186, %v185
    %v214 = vpack.c.b16 %v188, %v187
    %v215 = vpack.c.b16 %v190, %v189
    %v216 = vpack.c.b16 %v192, %v191
    %v219 = vunpack.c.l.b16 %v83
    %v220 = vunpack.c.h.b16 %v83
    %v221 = vunpack.c.l.b16 %v84
    %v222 = vunpack.c.h.b16 %v84
    %v223 = vpack.c.b16 %v221, %v219
    %v224 = vpack.c.b16 %v222, %v220
    %vm225 = vcmask 113664
    %v227 = vsel %vm225, %v193, 0
    %v230 = vsel %vm225, %v194, 0
    %v233 = vsel %vm225, %v195, 0
    %v236 = vsel %vm225, %v196, 0
    %v239 = vsel %vm225, %v197, 0
    %v242 = vsel %vm225, %v198, 0
    %v245 = vsel %vm225, %v199, 0
    %v248 = vsel %vm225, %v200, 0
    %v251 = vsel %vm225, %v201, 0
    %v254 = vsel %vm225, %v202, 0
    %v257 = vsel %vm225, %v203, 0
    %v260 = vsel %vm225, %v204, 0
    %v263 = vsel %vm225, %v205, 0
    %v266 = vsel %vm225, %v206, 0
    %v269 = vsel %vm225, %v207, 0
    %v272 = vsel %vm225, %v208, 0
    %v275 = vsel %vm225, %v209, 0
    %v278 = vsel %vm225, %v210, 0
    %v281 = vsel %vm225, %v211, 0
    %v284 = vsel %vm225, %v212, 0
    %v287 = vsel %vm225, %v213, 0
    %v290 = vsel %vm225, %v214, 0
    %v293 = vsel %vm225, %v215, 0
    %v296 = vsel %vm225, %v216, 0
    %vm298 = vcmask 1046528
    %v300 = vsel %vm298, %v223, 0
    %v303 = vsel %vm298, %v224, 0
    %305 = vmatprep.subr.bf16.mxu0 %v303
    %306 = vmatpush1.bf16.msra.mxu0 %v300
    %307 = vmatprep.subr.bf16.mxu0 0
    %308 = vmatpush1.bf16.msra.mxu0 0
    %309 = vmatprep.subr.bf16.mxu0 0
    %310 = vmatpush1.bf16.msra.mxu0 0
    %311 = vmatprep.subr.bf16.mxu0 0
    %312 = vmatpush1.bf16.msra.mxu0 0
    %313 = vmatprep.subr.bf16.mxu0 0
    %314 = vmatpush1.bf16.msra.mxu0 0
    %315 = vmatprep.subr.bf16.mxu0 0
    %316 = vmatpush1.bf16.msra.mxu0 0
    %317 = vmatprep.subr.bf16.mxu0 0
    %318 = vmatpush1.bf16.msra.mxu0 0
    %319 = vmatprep.subr.bf16.mxu0 0
    %320 = vmatpush1.bf16.msra.mxu0 0
    %321 = vmatprep.subr.bf16.mxu0 0
    %322 = vmatpush1.bf16.msra.mxu0 0
    %323 = vmatprep.subr.bf16.mxu0 0
    %324 = vmatpush1.bf16.msra.mxu0 0
    %325 = vmatprep.subr.bf16.mxu0 0
    %326 = vmatpush1.bf16.msra.mxu0 0
    %327 = vmatprep.subr.bf16.mxu0 0
    %328 = vmatpush1.bf16.msra.mxu0 0
    %329 = vmatprep.subr.bf16.mxu0 0
    %330 = vmatpush1.bf16.msra.mxu0 0
    %331 = vmatprep.subr.bf16.mxu0 0
    %332 = vmatpush1.bf16.msra.mxu0 0
    %333 = vmatprep.subr.bf16.mxu0 0
    %334 = vmatpush1.bf16.msra.mxu0 0
    %335 = vmatprep.subr.bf16.mxu0 0
    %336 = vmatpush1.bf16.msra.mxu0 0
    %337 = vmatprep.mubr.bf16.mxu0 0
    %338 = vmatmul.mubr.bf16.gmra.mrb[0].mxu0 %v227
    %v339 = vpop.f32.mrb[0].mxu0
    %v340 = vadd.f32 %v90, %v339
    %v341 = vpop.f32.mrb[0].mxu0
    %v342 = vadd.f32 %v94, %v341
    %v343 = vpop.f32.mrb[0].mxu0
    %v344 = vadd.f32 %v90, %v343
    %v345 = vpop.f32.mrb[0].mxu0
    %v346 = vadd.f32 %v94, %v345
    %347 = vmatprep.mubr.bf16.mxu0 0
    %348 = vmatmul.mubr.bf16.gmra.mrb[0].mxu0 %v230
    %v349 = vpop.f32.mrb[0].mxu0
    %v350 = vadd.f32 %v90, %v349
    %v351 = vpop.f32.mrb[0].mxu0
    %v352 = vadd.f32 %v94, %v351
    %v353 = vpop.f32.mrb[0].mxu0
    %v354 = vadd.f32 %v90, %v353
    %v355 = vpop.f32.mrb[0].mxu0
    %v356 = vadd.f32 %v94, %v355
    %357 = vmatprep.mubr.bf16.mxu0 0
    %358 = vmatmul.mubr.bf16.gmra.mrb[0].mxu0 %v233
    %v359 = vpop.f32.mrb[0].mxu0
    %v360 = vadd.f32 %v90, %v359
    %v361 = vpop.f32.mrb[0].mxu0
    %v362 = vadd.f32 %v94, %v361
    %v363 = vpop.f32.mrb[0].mxu0
    %v364 = vadd.f32 %v90, %v363
    %v365 = vpop.f32.mrb[0].mxu0
    %v366 = vadd.f32 %v94, %v365
    %367 = vmatprep.mubr.bf16.mxu0 0
    %368 = vmatmul.mubr.bf16.gmra.mrb[0].mxu0 %v236
    %v369 = vpop.f32.mrb[0].mxu0
    %v370 = vadd.f32 %v90, %v369
    %v371 = vpop.f32.mrb[0].mxu0
    %v372 = vadd.f32 %v94, %v371
    %v373 = vpop.f32.mrb[0].mxu0
    %v374 = vadd.f32 %v90, %v373
    %v375 = vpop.f32.mrb[0].mxu0
    %v376 = vadd.f32 %v94, %v375
    %377 = vmatprep.mubr.bf16.mxu0 0
    %378 = vmatmul.mubr.bf16.gmra.mrb[0].mxu0 %v239
    %v379 = vpop.f32.mrb[0].mxu0
    %v380 = vadd.f32 %v90, %v379
    %v381 = vpop.f32.mrb[0].mxu0
    %v382 = vadd.f32 %v94, %v381
    %v383 = vpop.f32.mrb[0].mxu0
    %v384 = vadd.f32 %v90, %v383
    %v385 = vpop.f32.mrb[0].mxu0
    %v386 = vadd.f32 %v94, %v385
    %387 = vmatprep.mubr.bf16.mxu0 0
    %388 = vmatmul.mubr.bf16.gmra.mrb[0].mxu0 %v242
    %v389 = vpop.f32.mrb[0].mxu0
    %v390 = vadd.f32 %v90, %v389
    %v391 = vpop.f32.mrb[0].mxu0
    %v392 = vadd.f32 %v94, %v391
    %v393 = vpop.f32.mrb[0].mxu0
    %v394 = vadd.f32 %v90, %v393
    %v395 = vpop.f32.mrb[0].mxu0
    %v396 = vadd.f32 %v94, %v395
    %397 = vmatprep.mubr.bf16.mxu0 0
    %398 = vmatmul.mubr.bf16.gmra.mrb[0].mxu0 %v245
    %v399 = vpop.f32.mrb[0].mxu0
    %v400 = vadd.f32 %v90, %v399
    %v401 = vpop.f32.mrb[0].mxu0
    %v402 = vadd.f32 %v94, %v401
    %v403 = vpop.f32.mrb[0].mxu0
    %v404 = vadd.f32 %v90, %v403
    %v405 = vpop.f32.mrb[0].mxu0
    %v406 = vadd.f32 %v94, %v405
    %407 = vmatprep.mubr.bf16.mxu0 0
    %408 = vmatmul.mubr.bf16.gmra.mrb[0].mxu0 %v248
    %v409 = vpop.f32.mrb[0].mxu0
    %v410 = vadd.f32 %v90, %v409
    %v411 = vpop.f32.mrb[0].mxu0
    %v412 = vadd.f32 %v94, %v411
    %v413 = vpop.f32.mrb[0].mxu0
    %v414 = vadd.f32 %v90, %v413
    %v415 = vpop.f32.mrb[0].mxu0
    %v416 = vadd.f32 %v94, %v415
    %417 = vmatprep.mubr.bf16.mxu0 0
    %418 = vmatmul.mubr.bf16.gmra.mrb[0].mxu0 %v251
    %v419 = vpop.f32.mrb[0].mxu0
    %v420 = vadd.f32 %v90, %v419
    %v421 = vpop.f32.mrb[0].mxu0
    %v422 = vadd.f32 %v94, %v421
    %v423 = vpop.f32.mrb[0].mxu0
    %v424 = vadd.f32 %v90, %v423
    %v425 = vpop.f32.mrb[0].mxu0
    %v426 = vadd.f32 %v94, %v425
    %427 = vmatprep.mubr.bf16.mxu0 0
    %428 = vmatmul.mubr.bf16.gmra.mrb[0].mxu0 %v254
    %v429 = vpop.f32.mrb[0].mxu0
    %v430 = vadd.f32 %v90, %v429
    %v431 = vpop.f32.mrb[0].mxu0
    %v432 = vadd.f32 %v94, %v431
    %v433 = vpop.f32.mrb[0].mxu0
    %v434 = vadd.f32 %v90, %v433
    %v435 = vpop.f32.mrb[0].mxu0
    %v436 = vadd.f32 %v94, %v435
    %437 = vmatprep.mubr.bf16.mxu0 0
    %438 = vmatmul.mubr.bf16.gmra.mrb[0].mxu0 %v257
    %v439 = vpop.f32.mrb[0].mxu0
    %v440 = vadd.f32 %v90, %v439
    %v441 = vpop.f32.mrb[0].mxu0
    %v442 = vadd.f32 %v94, %v441
    %v443 = vpop.f32.mrb[0].mxu0
    %v444 = vadd.f32 %v90, %v443
    %v445 = vpop.f32.mrb[0].mxu0
    %v446 = vadd.f32 %v94, %v445
    %447 = vmatprep.mubr.bf16.mxu0 0
    %448 = vmatmul.mubr.bf16.gmra.mrb[0].mxu0 %v260
    %v449 = vpop.f32.mrb[0].mxu0
    %v450 = vadd.f32 %v90, %v449
    %v451 = vpop.f32.mrb[0].mxu0
    %v452 = vadd.f32 %v94, %v451
    %v453 = vpop.f32.mrb[0].mxu0
    %v454 = vadd.f32 %v90, %v453
    %v455 = vpop.f32.mrb[0].mxu0
    %v456 = vadd.f32 %v94, %v455
    %457 = vmatprep.mubr.bf16.mxu0 0
    %458 = vmatmul.mubr.bf16.gmra.mrb[0].mxu0 %v263
    %v459 = vpop.f32.mrb[0].mxu0
    %v460 = vadd.f32 %v90, %v459
    %v461 = vpop.f32.mrb[0].mxu0
    %v462 = vadd.f32 %v94, %v461
    %v463 = vpop.f32.mrb[0].mxu0
    %v464 = vadd.f32 %v90, %v463
    %v465 = vpop.f32.mrb[0].mxu0
    %v466 = vadd.f32 %v94, %v465
    %467 = vmatprep.mubr.bf16.mxu0 0
    %468 = vmatmul.mubr.bf16.gmra.mrb[0].mxu0 %v266
    %v469 = vpop.f32.mrb[0].mxu0
    %v470 = vadd.f32 %v90, %v469
    %v471 = vpop.f32.mrb[0].mxu0
    %v472 = vadd.f32 %v94, %v471
    %v473 = vpop.f32.mrb[0].mxu0
    %v474 = vadd.f32 %v90, %v473
    %v475 = vpop.f32.mrb[0].mxu0
    %v476 = vadd.f32 %v94, %v475
    %477 = vmatprep.mubr.bf16.mxu0 0
    %478 = vmatmul.mubr.bf16.gmra.mrb[0].mxu0 %v269
    %v479 = vpop.f32.mrb[0].mxu0
    %v480 = vadd.f32 %v90, %v479
    %v481 = vpop.f32.mrb[0].mxu0
    %v482 = vadd.f32 %v94, %v481
    %v483 = vpop.f32.mrb[0].mxu0
    %v484 = vadd.f32 %v90, %v483
    %v485 = vpop.f32.mrb[0].mxu0
    %v486 = vadd.f32 %v94, %v485
    %487 = vmatprep.mubr.bf16.mxu0 0
    %488 = vmatmul.mubr.bf16.gmra.mrb[0].mxu0 %v272
    %v489 = vpop.f32.mrb[0].mxu0
    %v490 = vadd.f32 %v90, %v489
    %v491 = vpop.f32.mrb[0].mxu0
    %v492 = vadd.f32 %v94, %v491
    %v493 = vpop.f32.mrb[0].mxu0
    %v494 = vadd.f32 %v90, %v493
    %v495 = vpop.f32.mrb[0].mxu0
    %v496 = vadd.f32 %v94, %v495
    %497 = vmatprep.mubr.bf16.mxu0 0
    %498 = vmatmul.mubr.bf16.gmra.mrb[0].mxu0 %v275
    %v499 = vpop.f32.mrb[0].mxu0
    %v500 = vadd.f32 %v90, %v499
    %v501 = vpop.f32.mrb[0].mxu0
    %v502 = vadd.f32 %v94, %v501
    %v503 = vpop.f32.mrb[0].mxu0
    %v504 = vadd.f32 %v90, %v503
    %v505 = vpop.f32.mrb[0].mxu0
    %v506 = vadd.f32 %v94, %v505
    %507 = vmatprep.mubr.bf16.mxu0 0
    %508 = vmatmul.mubr.bf16.gmra.mrb[0].mxu0 %v278
    %v509 = vpop.f32.mrb[0].mxu0
    %v510 = vadd.f32 %v90, %v509
    %v511 = vpop.f32.mrb[0].mxu0
    %v512 = vadd.f32 %v94, %v511
    %v513 = vpop.f32.mrb[0].mxu0
    %v514 = vadd.f32 %v90, %v513
    %v515 = vpop.f32.mrb[0].mxu0
    %v516 = vadd.f32 %v94, %v515
    %517 = vmatprep.mubr.bf16.mxu0 0
    %518 = vmatmul.mubr.bf16.gmra.mrb[0].mxu0 %v281
    %v519 = vpop.f32.mrb[0].mxu0
    %v520 = vadd.f32 %v90, %v519
    %v521 = vpop.f32.mrb[0].mxu0
    %v522 = vadd.f32 %v94, %v521
    %v523 = vpop.f32.mrb[0].mxu0
    %v524 = vadd.f32 %v90, %v523
    %v525 = vpop.f32.mrb[0].mxu0
    %v526 = vadd.f32 %v94, %v525
    %527 = vmatprep.mubr.bf16.mxu0 0
    %528 = vmatmul.mubr.bf16.gmra.mrb[0].mxu0 %v284
    %v529 = vpop.f32.mrb[0].mxu0
    %v530 = vadd.f32 %v90, %v529
    %v531 = vpop.f32.mrb[0].mxu0
    %v532 = vadd.f32 %v94, %v531
    %v533 = vpop.f32.mrb[0].mxu0
    %v534 = vadd.f32 %v90, %v533
    %v535 = vpop.f32.mrb[0].mxu0
    %v536 = vadd.f32 %v94, %v535
    %537 = vmatprep.mubr.bf16.mxu0 0
    %538 = vmatmul.mubr.bf16.gmra.mrb[0].mxu0 %v287
    %v539 = vpop.f32.mrb[0].mxu0
    %v540 = vadd.f32 %v90, %v539
    %v541 = vpop.f32.mrb[0].mxu0
    %v542 = vadd.f32 %v94, %v541
    %v543 = vpop.f32.mrb[0].mxu0
    %v544 = vadd.f32 %v90, %v543
    %v545 = vpop.f32.mrb[0].mxu0
    %v546 = vadd.f32 %v94, %v545
    %547 = vmatprep.mubr.bf16.mxu0 0
    %548 = vmatmul.mubr.bf16.gmra.mrb[0].mxu0 %v290
    %v549 = vpop.f32.mrb[0].mxu0
    %v550 = vadd.f32 %v90, %v549
    %v551 = vpop.f32.mrb[0].mxu0
    %v552 = vadd.f32 %v94, %v551
    %v553 = vpop.f32.mrb[0].mxu0
    %v554 = vadd.f32 %v90, %v553
    %v555 = vpop.f32.mrb[0].mxu0
    %v556 = vadd.f32 %v94, %v555
    %557 = vmatprep.mubr.bf16.mxu0 0
    %558 = vmatmul.mubr.bf16.gmra.mrb[0].mxu0 %v293
    %v559 = vpop.f32.mrb[0].mxu0
    %v560 = vadd.f32 %v90, %v559
    %v561 = vpop.f32.mrb[0].mxu0
    %v562 = vadd.f32 %v94, %v561
    %v563 = vpop.f32.mrb[0].mxu0
    %v564 = vadd.f32 %v90, %v563
    %v565 = vpop.f32.mrb[0].mxu0
    %v566 = vadd.f32 %v94, %v565
    %567 = vmatprep.mubr.bf16.mxu0 0
    %568 = vmatmul.mubr.bf16.gmra.mrb[0].mxu0 %v296
    %v569 = vpop.f32.mrb[0].mxu0
    %v570 = vadd.f32 %v90, %v569
    %v571 = vpop.f32.mrb[0].mxu0
    %v572 = vadd.f32 %v94, %v571
    %v573 = vpop.f32.mrb[0].mxu0
    %v574 = vadd.f32 %v90, %v573
    %v575 = vpop.f32.mrb[0].mxu0
    %v576 = vadd.f32 %v94, %v575
    %577 = vdwg.mxu0
    %v578 = vmax.f32 %v340, 0.0
    %v579 = vmax.f32 %v342, 0.0
    %v580 = vmax.f32 %v344, 0.0
    %v581 = vmax.f32 %v346, 0.0
    %v582 = vmax.f32 %v350, 0.0
    %v583 = vmax.f32 %v352, 0.0
    %v584 = vmax.f32 %v354, 0.0
    %v585 = vmax.f32 %v356, 0.0
    %v586 = vmax.f32 %v360, 0.0
    %v587 = vmax.f32 %v362, 0.0
    %v588 = vmax.f32 %v364, 0.0
    %v589 = vmax.f32 %v366, 0.0
    %v590 = vmax.f32 %v370, 0.0
    %v591 = vmax.f32 %v372, 0.0
    %v592 = vmax.f32 %v374, 0.0
    %v593 = vmax.f32 %v376, 0.0
    %v594 = vmax.f32 %v380, 0.0
    %v595 = vmax.f32 %v382, 0.0
    %v596 = vmax.f32 %v384, 0.0
    %v597 = vmax.f32 %v386, 0.0
    %v598 = vmax.f32 %v390, 0.0
    %v599 = vmax.f32 %v392, 0.0
    %v600 = vmax.f32 %v394, 0.0
    %v601 = vmax.f32 %v396, 0.0
    %v602 = vmax.f32 %v400, 0.0
    %v603 = vmax.f32 %v402, 0.0
    %v604 = vmax.f32 %v404, 0.0
    %v605 = vmax.f32 %v406, 0.0
    %v606 = vmax.f32 %v410, 0.0
    %v607 = vmax.f32 %v412, 0.0
    %v608 = vmax.f32 %v414, 0.0
    %v609 = vmax.f32 %v416, 0.0
    %v610 = vmax.f32 %v420, 0.0
    %v611 = vmax.f32 %v422, 0.0
    %v612 = vmax.f32 %v424, 0.0
    %v613 = vmax.f32 %v426, 0.0
    %v614 = vmax.f32 %v430, 0.0
    %v615 = vmax.f32 %v432, 0.0
    %v616 = vmax.f32 %v434, 0.0
    %v617 = vmax.f32 %v436, 0.0
    %v618 = vmax.f32 %v440, 0.0
    %v619 = vmax.f32 %v442, 0.0
    %v620 = vmax.f32 %v444, 0.0
    %v621 = vmax.f32 %v446, 0.0
    %v622 = vmax.f32 %v450, 0.0
    %v623 = vmax.f32 %v452, 0.0
    %v624 = vmax.f32 %v454, 0.0
    %v625 = vmax.f32 %v456, 0.0
    %v626 = vmax.f32 %v460, 0.0
    %v627 = vmax.f32 %v462, 0.0
    %v628 = vmax.f32 %v464, 0.0
    %v629 = vmax.f32 %v466, 0.0
    %v630 = vmax.f32 %v470, 0.0
    %v631 = vmax.f32 %v472, 0.0
    %v632 = vmax.f32 %v474, 0.0
    %v633 = vmax.f32 %v476, 0.0
    %v634 = vmax.f32 %v480, 0.0
    %v635 = vmax.f32 %v482, 0.0
    %v636 = vmax.f32 %v484, 0.0
    %v637 = vmax.f32 %v486, 0.0
    %v638 = vmax.f32 %v490, 0.0
    %v639 = vmax.f32 %v492, 0.0
    %v640 = vmax.f32 %v494, 0.0
    %v641 = vmax.f32 %v496, 0.0
    %v642 = vmax.f32 %v500, 0.0
    %v643 = vmax.f32 %v502, 0.0
    %v644 = vmax.f32 %v504, 0.0
    %v645 = vmax.f32 %v506, 0.0
    %v646 = vmax.f32 %v510, 0.0
    %v647 = vmax.f32 %v512, 0.0
    %v648 = vmax.f32 %v514, 0.0
    %v649 = vmax.f32 %v516, 0.0
    %v650 = vmax.f32 %v520, 0.0
    %v651 = vmax.f32 %v522, 0.0
    %v652 = vmax.f32 %v524, 0.0
    %v653 = vmax.f32 %v526, 0.0
    %v654 = vmax.f32 %v530, 0.0
    %v655 = vmax.f32 %v532, 0.0
    %v656 = vmax.f32 %v534, 0.0
    %v657 = vmax.f32 %v536, 0.0
    %v658 = vmax.f32 %v540, 0.0
    %v659 = vmax.f32 %v542, 0.0
    %v660 = vmax.f32 %v544, 0.0
    %v661 = vmax.f32 %v546, 0.0
    %v662 = vmax.f32 %v550, 0.0
    %v663 = vmax.f32 %v552, 0.0
    %v664 = vmax.f32 %v554, 0.0
    %v665 = vmax.f32 %v556, 0.0
    %v666 = vmax.f32 %v560, 0.0
    %v667 = vmax.f32 %v562, 0.0
    %v668 = vmax.f32 %v564, 0.0
    %v669 = vmax.f32 %v566, 0.0
    %v670 = vmax.f32 %v570, 0.0
    %v671 = vmax.f32 %v572, 0.0
    %v672 = vmax.f32 %v574, 0.0
    %v673 = vmax.f32 %v576, 0.0
    %v674 = vpack.c.bf16 %v580, %v578
    %v675 = vpack.c.bf16 %v581, %v579
    %v676 = vpack.c.bf16 %v584, %v582
    %v677 = vpack.c.bf16 %v585, %v583
    %v678 = vpack.c.bf16 %v588, %v586
    %v679 = vpack.c.bf16 %v589, %v587
    %v680 = vpack.c.bf16 %v592, %v590
    %v681 = vpack.c.bf16 %v593, %v591
    %v682 = vpack.c.bf16 %v596, %v594
    %v683 = vpack.c.bf16 %v597, %v595
    %v684 = vpack.c.bf16 %v600, %v598
    %v685 = vpack.c.bf16 %v601, %v599
    %v686 = vpack.c.bf16 %v604, %v602
    %v687 = vpack.c.bf16 %v605, %v603
    %v688 = vpack.c.bf16 %v608, %v606
    %v689 = vpack.c.bf16 %v609, %v607
    %v690 = vpack.c.bf16 %v612, %v610
    %v691 = vpack.c.bf16 %v613, %v611
    %v692 = vpack.c.bf16 %v616, %v614
    %v693 = vpack.c.bf16 %v617, %v615
    %v694 = vpack.c.bf16 %v620, %v618
    %v695 = vpack.c.bf16 %v621, %v619
    %v696 = vpack.c.bf16 %v624, %v622
    %v697 = vpack.c.bf16 %v625, %v623
    %v698 = vpack.c.bf16 %v628, %v626
    %v699 = vpack.c.bf16 %v629, %v627
    %v700 = vpack.c.bf16 %v632, %v630
    %v701 = vpack.c.bf16 %v633, %v631
    %v702 = vpack.c.bf16 %v636, %v634
    %v703 = vpack.c.bf16 %v637, %v635
    %v704 = vpack.c.bf16 %v640, %v638
    %v705 = vpack.c.bf16 %v641, %v639
    %v706 = vpack.c.bf16 %v644, %v642
    %v707 = vpack.c.bf16 %v645, %v643
    %v708 = vpack.c.bf16 %v648, %v646
    %v709 = vpack.c.bf16 %v649, %v647
    %v710 = vpack.c.bf16 %v652, %v650
    %v711 = vpack.c.bf16 %v653, %v651
    %v712 = vpack.c.bf16 %v656, %v654
    %v713 = vpack.c.bf16 %v657, %v655
    %v714 = vpack.c.bf16 %v660, %v658
    %v715 = vpack.c.bf16 %v661, %v659
    %v716 = vpack.c.bf16 %v664, %v662
    %v717 = vpack.c.bf16 %v665, %v663
    %v718 = vpack.c.bf16 %v668, %v666
    %v719 = vpack.c.bf16 %v669, %v667
    %v720 = vpack.c.bf16 %v672, %v670
    %v721 = vpack.c.bf16 %v673, %v671
    %v722 = vld [vmem:[#allocation2] sm:$0xff]
    %v723 = vld [vmem:[#allocation2 + $0x8] sm:$0xff]
    %v724 = vld [vmem:[#allocation2 + $0x10] sm:$0xff]
    %v725 = vld [vmem:[#allocation2 + $0x18] sm:$0xff]
    %v726 = vld [vmem:[#allocation2 + $0x20] sm:$0xff]
    %v727 = vld [vmem:[#allocation2 + $0x28] sm:$0xff]
    %v728 = vld [vmem:[#allocation2 + $0x30] sm:$0xff]
    %v729 = vld [vmem:[#allocation2 + $0x38] sm:$0xff]
    %v730 = vld [vmem:[#allocation2 + $0x40] sm:$0xff]
    %v731 = vld [vmem:[#allocation2 + $0x48] sm:$0xff]
    %v732 = vld [vmem:[#allocation2 + $0x50] sm:$0xff]
    %v733 = vld [vmem:[#allocation2 + $0x58] sm:$0xff]
    %v734 = vld [vmem:[#allocation2 + $0x60] sm:$0xff]
    %v735 = vld [vmem:[#allocation2 + $0x68] sm:$0xff]
    %v736 = vld [vmem:[#allocation2 + $0x70] sm:$0xff]
    %v737 = vld [vmem:[#allocation2 + $0x78] sm:$0xff]
    %v738 = vld [vmem:[#allocation2 + $0x80] sm:$0xff]
    %v739 = vld [vmem:[#allocation2 + $0x88] sm:$0xff]
    %v740 = vld [vmem:[#allocation2 + $0x90] sm:$0xff]
    %v741 = vld [vmem:[#allocation2 + $0x98] sm:$0xff]
    %v742 = vld [vmem:[#allocation2 + $0xa0] sm:$0xff]
    %v743 = vld [vmem:[#allocation2 + $0xa8] sm:$0xff]
    %v744 = vld [vmem:[#allocation2 + $0xb0] sm:$0xff]
    %v745 = vld [vmem:[#allocation2 + $0xb8] sm:$0xff]
    %v746 = vld [vmem:[#allocation2 + $0xc0] sm:$0xff]
    %v747 = vld [vmem:[#allocation2 + $0xc8] sm:$0xff]
    %v748 = vld [vmem:[#allocation2 + $0xd0] sm:$0xff]
    %v749 = vld [vmem:[#allocation2 + $0xd8] sm:$0xff]
    %v750 = vld [vmem:[#allocation2 + $0xe0] sm:$0xff]
    %v751 = vld [vmem:[#allocation2 + $0xe8] sm:$0xff]
    %v752 = vld [vmem:[#allocation2 + $0xf0] sm:$0xff]
    %v753 = vld [vmem:[#allocation2 + $0xf8] sm:$0xff]
    %v754 = vld [vmem:[%s4] sm:$0x3]
    %v756 = vlaneseq
    %v757 = vshrl.u32 %v756, 7
    %v758 = vsub.s32 0, %v757
    %v759 = vrot.slane %v754, %v758
    %v760 = vlaneseq
    %v761 = vshrl.u32 %v760, 7
    %v762 = vsub.s32 1, %v761
    %v763 = vrot.slane %v754, %v762
    %v798 = vunpack.c.l.b16 %v722
    %v799 = vunpack.c.h.b16 %v722
    %v800 = vunpack.c.l.b16 %v723
    %v801 = vunpack.c.h.b16 %v723
    %v802 = vunpack.c.l.b16 %v724
    %v803 = vunpack.c.h.b16 %v724
    %v804 = vunpack.c.l.b16 %v725
    %v805 = vunpack.c.h.b16 %v725
    %v806 = vunpack.c.l.b16 %v726
    %v807 = vunpack.c.h.b16 %v726
    %v808 = vunpack.c.l.b16 %v727
    %v809 = vunpack.c.h.b16 %v727
    %v810 = vunpack.c.l.b16 %v728
    %v811 = vunpack.c.h.b16 %v728
    %v812 = vunpack.c.l.b16 %v729
    %v813 = vunpack.c.h.b16 %v729
    %v814 = vunpack.c.l.b16 %v730
    %v815 = vunpack.c.h.b16 %v730
    %v816 = vunpack.c.l.b16 %v731
    %v817 = vunpack.c.h.b16 %v731
    %v818 = vunpack.c.l.b16 %v732
    %v819 = vunpack.c.h.b16 %v732
    %v820 = vunpack.c.l.b16 %v733
    %v821 = vunpack.c.h.b16 %v733
    %v822 = vunpack.c.l.b16 %v734
    %v823 = vunpack.c.h.b16 %v734
    %v824 = vunpack.c.l.b16 %v735
    %v825 = vunpack.c.h.b16 %v735
    %v826 = vunpack.c.l.b16 %v736
    %v827 = vunpack.c.h.b16 %v736
    %v828 = vunpack.c.l.b16 %v737
    %v829 = vunpack.c.h.b16 %v737
    %v830 = vunpack.c.l.b16 %v738
    %v831 = vunpack.c.h.b16 %v738
    %v832 = vunpack.c.l.b16 %v739
    %v833 = vunpack.c.h.b16 %v739
    %v834 = vunpack.c.l.b16 %v740
    %v835 = vunpack.c.h.b16 %v740
    %v836 = vunpack.c.l.b16 %v741
    %v837 = vunpack.c.h.b16 %v741
    %v838 = vunpack.c.l.b16 %v742
    %v839 = vunpack.c.h.b16 %v742
    %v840 = vunpack.c.l.b16 %v743
    %v841 = vunpack.c.h.b16 %v743
    %v842 = vunpack.c.l.b16 %v744
    %v843 = vunpack.c.h.b16 %v744
    %v844 = vunpack.c.l.b16 %v745
    %v845 = vunpack.c.h.b16 %v745
    %v846 = vunpack.c.l.b16 %v746
    %v847 = vunpack.c.h.b16 %v746
    %v848 = vunpack.c.l.b16 %v747
    %v849 = vunpack.c.h.b16 %v747
    %v850 = vunpack.c.l.b16 %v748
    %v851 = vunpack.c.h.b16 %v748
    %v852 = vunpack.c.l.b16 %v749
    %v853 = vunpack.c.h.b16 %v749
    %v854 = vunpack.c.l.b16 %v750
    %v855 = vunpack.c.h.b16 %v750
    %v856 = vunpack.c.l.b16 %v751
    %v857 = vunpack.c.h.b16 %v751
    %v858 = vunpack.c.l.b16 %v752
    %v859 = vunpack.c.h.b16 %v752
    %v860 = vunpack.c.l.b16 %v753
    %v861 = vunpack.c.h.b16 %v753
    %v862 = vpack.c.b16 %v800, %v798
    %v863 = vpack.c.b16 %v801, %v799
    %v864 = vpack.c.b16 %v804, %v802
    %v865 = vpack.c.b16 %v805, %v803
    %v866 = vpack.c.b16 %v808, %v806
    %v867 = vpack.c.b16 %v809, %v807
    %v868 = vpack.c.b16 %v812, %v810
    %v869 = vpack.c.b16 %v813, %v811
    %v870 = vpack.c.b16 %v816, %v814
    %v871 = vpack.c.b16 %v817, %v815
    %v872 = vpack.c.b16 %v820, %v818
    %v873 = vpack.c.b16 %v821, %v819
    %v874 = vpack.c.b16 %v824, %v822
    %v875 = vpack.c.b16 %v825, %v823
    %v876 = vpack.c.b16 %v828, %v826
    %v877 = vpack.c.b16 %v829, %v827
    %v878 = vpack.c.b16 %v832, %v830
    %v879 = vpack.c.b16 %v833, %v831
    %v880 = vpack.c.b16 %v836, %v834
    %v881 = vpack.c.b16 %v837, %v835
    %v882 = vpack.c.b16 %v840, %v838
    %v883 = vpack.c.b16 %v841, %v839
    %v884 = vpack.c.b16 %v844, %v842
    %v885 = vpack.c.b16 %v845, %v843
    %v886 = vpack.c.b16 %v848, %v846
    %v887 = vpack.c.b16 %v849, %v847
    %v888 = vpack.c.b16 %v852, %v850
    %v889 = vpack.c.b16 %v853, %v851
    %v890 = vpack.c.b16 %v856, %v854
    %v891 = vpack.c.b16 %v857, %v855
    %v892 = vpack.c.b16 %v860, %v858
    %v893 = vpack.c.b16 %v861, %v859
    %926 = vmatprep.subr.bf16.mxu0 %v863
    %927 = vmatpush1.bf16.msra.mxu0 %v862
    %928 = vmatprep.subr.bf16.mxu0 %v865
    %929 = vmatpush1.bf16.msra.mxu0 %v864
    %930 = vmatprep.subr.bf16.mxu0 %v867
    %931 = vmatpush1.bf16.msra.mxu0 %v866
    %932 = vmatprep.subr.bf16.mxu0 %v869
    %933 = vmatpush1.bf16.msra.mxu0 %v868
    %934 = vmatprep.subr.bf16.mxu0 %v871
    %935 = vmatpush1.bf16.msra.mxu0 %v870
    %936 = vmatprep.subr.bf16.mxu0 %v873
    %937 = vmatpush1.bf16.msra.mxu0 %v872
    %938 = vmatprep.subr.bf16.mxu0 %v875
    %939 = vmatpush1.bf16.msra.mxu0 %v874
    %940 = vmatprep.subr.bf16.mxu0 %v877
    %941 = vmatpush1.bf16.msra.mxu0 %v876
    %942 = vmatprep.subr.bf16.mxu0 %v879
    %943 = vmatpush1.bf16.msra.mxu0 %v878
    %944 = vmatprep.subr.bf16.mxu0 %v881
    %945 = vmatpush1.bf16.msra.mxu0 %v880
    %946 = vmatprep.subr.bf16.mxu0 %v883
    %947 = vmatpush1.bf16.msra.mxu0 %v882
    %948 = vmatprep.subr.bf16.mxu0 %v885
    %949 = vmatpush1.bf16.msra.mxu0 %v884
    %950 = vmatprep.subr.bf16.mxu0 %v887
    %951 = vmatpush1.bf16.msra.mxu0 %v886
    %952 = vmatprep.subr.bf16.mxu0 %v889
    %953 = vmatpush1.bf16.msra.mxu0 %v888
    %954 = vmatprep.subr.bf16.mxu0 %v891
    %955 = vmatpush1.bf16.msra.mxu0 %v890
    %956 = vmatprep.subr.bf16.mxu0 %v893
    %957 = vmatpush1.bf16.msra.mxu0 %v892
    %958 = vmatprep.mubr.bf16.mxu0 %v675
    %959 = vmatmul.mubr.bf16.gmra.mrb[0].mxu0 %v674
    %v960 = vpop.f32.mrb[0].mxu0
    %v961 = vadd.f32 %v759, %v960
    %v962 = vpop.f32.mrb[0].mxu0
    %v963 = vadd.f32 %v763, %v962
    %v964 = vpop.f32.mrb[0].mxu0
    %v965 = vadd.f32 %v759, %v964
    %v966 = vpop.f32.mrb[0].mxu0
    %v967 = vadd.f32 %v763, %v966
    %968 = vmatprep.mubr.bf16.mxu0 %v677
    %969 = vmatmul.mubr.bf16.gmra.mrb[0].mxu0 %v676
    %v970 = vpop.f32.mrb[0].mxu0
    %v971 = vadd.f32 %v759, %v970
    %v972 = vpop.f32.mrb[0].mxu0
    %v973 = vadd.f32 %v763, %v972
    %v974 = vpop.f32.mrb[0].mxu0
    %v975 = vadd.f32 %v759, %v974
    %v976 = vpop.f32.mrb[0].mxu0
    %v977 = vadd.f32 %v763, %v976
    %978 = vmatprep.mubr.bf16.mxu0 %v679
    %979 = vmatmul.mubr.bf16.gmra.mrb[0].mxu0 %v678
    %v980 = vpop.f32.mrb[0].mxu0
    %v981 = vadd.f32 %v759, %v980
    %v982 = vpop.f32.mrb[0].mxu0
    %v983 = vadd.f32 %v763, %v982
    %v984 = vpop.f32.mrb[0].mxu0
    %v985 = vadd.f32 %v759, %v984
    %v986 = vpop.f32.mrb[0].mxu0
    %v987 = vadd.f32 %v763, %v986
    %988 = vmatprep.mubr.bf16.mxu0 %v681
    %989 = vmatmul.mubr.bf16.gmra.mrb[0].mxu0 %v680
    %v990 = vpop.f32.mrb[0].mxu0
    %v991 = vadd.f32 %v759, %v990
    %v992 = vpop.f32.mrb[0].mxu0
    %v993 = vadd.f32 %v763, %v992
    %v994 = vpop.f32.mrb[0].mxu0
    %v995 = vadd.f32 %v759, %v994
    %v996 = vpop.f32.mrb[0].mxu0
    %v997 = vadd.f32 %v763, %v996
    %998 = vmatprep.mubr.bf16.mxu0 %v683
    %999 = vmatmul.mubr.bf16.gmra.mrb[0].mxu0 %v682
    %v1000 = vpop.f32.mrb[0].mxu0
    %v1001 = vadd.f32 %v759, %v1000
    %v1002 = vpop.f32.mrb[0].mxu0
    %v1003 = vadd.f32 %v763, %v1002
    %v1004 = vpop.f32.mrb[0].mxu0
    %v1005 = vadd.f32 %v759, %v1004
    %v1006 = vpop.f32.mrb[0].mxu0
    %v1007 = vadd.f32 %v763, %v1006
    %1008 = vmatprep.mubr.bf16.mxu0 %v685
    %1009 = vmatmul.mubr.bf16.gmra.mrb[0].mxu0 %v684
    %v1010 = vpop.f32.mrb[0].mxu0
    %v1011 = vadd.f32 %v759, %v1010
    %v1012 = vpop.f32.mrb[0].mxu0
    %v1013 = vadd.f32 %v763, %v1012
    %v1014 = vpop.f32.mrb[0].mxu0
    %v1015 = vadd.f32 %v759, %v1014
    %v1016 = vpop.f32.mrb[0].mxu0
    %v1017 = vadd.f32 %v763, %v1016
    %1018 = vmatprep.mubr.bf16.mxu0 %v687
    %1019 = vmatmul.mubr.bf16.gmra.mrb[0].mxu0 %v686
    %v1020 = vpop.f32.mrb[0].mxu0
    %v1021 = vadd.f32 %v759, %v1020
    %v1022 = vpop.f32.mrb[0].mxu0
    %v1023 = vadd.f32 %v763, %v1022
    %v1024 = vpop.f32.mrb[0].mxu0
    %v1025 = vadd.f32 %v759, %v1024
    %v1026 = vpop.f32.mrb[0].mxu0
    %v1027 = vadd.f32 %v763, %v1026
    %1028 = vmatprep.mubr.bf16.mxu0 %v689
    %1029 = vmatmul.mubr.bf16.gmra.mrb[0].mxu0 %v688
    %v1030 = vpop.f32.mrb[0].mxu0
    %v1031 = vadd.f32 %v759, %v1030
    %v1032 = vpop.f32.mrb[0].mxu0
    %v1033 = vadd.f32 %v763, %v1032
    %v1034 = vpop.f32.mrb[0].mxu0
    %v1035 = vadd.f32 %v759, %v1034
    %v1036 = vpop.f32.mrb[0].mxu0
    %v1037 = vadd.f32 %v763, %v1036
    %1038 = vmatprep.mubr.bf16.mxu0 %v691
    %1039 = vmatmul.mubr.bf16.gmra.mrb[0].mxu0 %v690
    %v1040 = vpop.f32.mrb[0].mxu0
    %v1041 = vadd.f32 %v759, %v1040
    %v1042 = vpop.f32.mrb[0].mxu0
    %v1043 = vadd.f32 %v763, %v1042
    %v1044 = vpop.f32.mrb[0].mxu0
    %v1045 = vadd.f32 %v759, %v1044
    %v1046 = vpop.f32.mrb[0].mxu0
    %v1047 = vadd.f32 %v763, %v1046
    %1048 = vmatprep.mubr.bf16.mxu0 %v693
    %1049 = vmatmul.mubr.bf16.gmra.mrb[0].mxu0 %v692
    %v1050 = vpop.f32.mrb[0].mxu0
    %v1051 = vadd.f32 %v759, %v1050
    %v1052 = vpop.f32.mrb[0].mxu0
    %v1053 = vadd.f32 %v763, %v1052
    %v1054 = vpop.f32.mrb[0].mxu0
    %v1055 = vadd.f32 %v759, %v1054
    %v1056 = vpop.f32.mrb[0].mxu0
    %v1057 = vadd.f32 %v763, %v1056
    %1058 = vmatprep.mubr.bf16.mxu0 %v695
    %1059 = vmatmul.mubr.bf16.gmra.mrb[0].mxu0 %v694
    %v1060 = vpop.f32.mrb[0].mxu0
    %v1061 = vadd.f32 %v759, %v1060
    %v1062 = vpop.f32.mrb[0].mxu0
    %v1063 = vadd.f32 %v763, %v1062
    %v1064 = vpop.f32.mrb[0].mxu0
    %v1065 = vadd.f32 %v759, %v1064
    %v1066 = vpop.f32.mrb[0].mxu0
    %v1067 = vadd.f32 %v763, %v1066
    %1068 = vmatprep.mubr.bf16.mxu0 %v697
    %1069 = vmatmul.mubr.bf16.gmra.mrb[0].mxu0 %v696
    %v1070 = vpop.f32.mrb[0].mxu0
    %v1071 = vadd.f32 %v759, %v1070
    %v1072 = vpop.f32.mrb[0].mxu0
    %v1073 = vadd.f32 %v763, %v1072
    %v1074 = vpop.f32.mrb[0].mxu0
    %v1075 = vadd.f32 %v759, %v1074
    %v1076 = vpop.f32.mrb[0].mxu0
    %v1077 = vadd.f32 %v763, %v1076
    %1078 = vmatprep.mubr.bf16.mxu0 %v699
    %1079 = vmatmul.mubr.bf16.gmra.mrb[0].mxu0 %v698
    %v1080 = vpop.f32.mrb[0].mxu0
    %v1081 = vadd.f32 %v759, %v1080
    %v1082 = vpop.f32.mrb[0].mxu0
    %v1083 = vadd.f32 %v763, %v1082
    %v1084 = vpop.f32.mrb[0].mxu0
    %v1085 = vadd.f32 %v759, %v1084
    %v1086 = vpop.f32.mrb[0].mxu0
    %v1087 = vadd.f32 %v763, %v1086
    %1088 = vmatprep.mubr.bf16.mxu0 %v701
    %1089 = vmatmul.mubr.bf16.gmra.mrb[0].mxu0 %v700
    %v1090 = vpop.f32.mrb[0].mxu0
    %v1091 = vadd.f32 %v759, %v1090
    %v1092 = vpop.f32.mrb[0].mxu0
    %v1093 = vadd.f32 %v763, %v1092
    %v1094 = vpop.f32.mrb[0].mxu0
    %v1095 = vadd.f32 %v759, %v1094
    %v1096 = vpop.f32.mrb[0].mxu0
    %v1097 = vadd.f32 %v763, %v1096
    %1098 = vmatprep.mubr.bf16.mxu0 %v703
    %1099 = vmatmul.mubr.bf16.gmra.mrb[0].mxu0 %v702
    %v1100 = vpop.f32.mrb[0].mxu0
    %v1101 = vadd.f32 %v759, %v1100
    %v1102 = vpop.f32.mrb[0].mxu0
    %v1103 = vadd.f32 %v763, %v1102
    %v1104 = vpop.f32.mrb[0].mxu0
    %v1105 = vadd.f32 %v759, %v1104
    %v1106 = vpop.f32.mrb[0].mxu0
    %v1107 = vadd.f32 %v763, %v1106
    %1108 = vmatprep.mubr.bf16.mxu0 %v705
    %1109 = vmatmul.mubr.bf16.gmra.mrb[0].mxu0 %v704
    %v1110 = vpop.f32.mrb[0].mxu0
    %v1111 = vadd.f32 %v759, %v1110
    %v1112 = vpop.f32.mrb[0].mxu0
    %v1113 = vadd.f32 %v763, %v1112
    %v1114 = vpop.f32.mrb[0].mxu0
    %v1115 = vadd.f32 %v759, %v1114
    %v1116 = vpop.f32.mrb[0].mxu0
    %v1117 = vadd.f32 %v763, %v1116
    %1118 = vmatprep.mubr.bf16.mxu0 %v707
    %1119 = vmatmul.mubr.bf16.gmra.mrb[0].mxu0 %v706
    %v1120 = vpop.f32.mrb[0].mxu0
    %v1121 = vadd.f32 %v759, %v1120
    %v1122 = vpop.f32.mrb[0].mxu0
    %v1123 = vadd.f32 %v763, %v1122
    %v1124 = vpop.f32.mrb[0].mxu0
    %v1125 = vadd.f32 %v759, %v1124
    %v1126 = vpop.f32.mrb[0].mxu0
    %v1127 = vadd.f32 %v763, %v1126
    %1128 = vmatprep.mubr.bf16.mxu0 %v709
    %1129 = vmatmul.mubr.bf16.gmra.mrb[0].mxu0 %v708
    %v1130 = vpop.f32.mrb[0].mxu0
    %v1131 = vadd.f32 %v759, %v1130
    %v1132 = vpop.f32.mrb[0].mxu0
    %v1133 = vadd.f32 %v763, %v1132
    %v1134 = vpop.f32.mrb[0].mxu0
    %v1135 = vadd.f32 %v759, %v1134
    %v1136 = vpop.f32.mrb[0].mxu0
    %v1137 = vadd.f32 %v763, %v1136
    %1138 = vmatprep.mubr.bf16.mxu0 %v711
    %1139 = vmatmul.mubr.bf16.gmra.mrb[0].mxu0 %v710
    %v1140 = vpop.f32.mrb[0].mxu0
    %v1141 = vadd.f32 %v759, %v1140
    %v1142 = vpop.f32.mrb[0].mxu0
    %v1143 = vadd.f32 %v763, %v1142
    %v1144 = vpop.f32.mrb[0].mxu0
    %v1145 = vadd.f32 %v759, %v1144
    %v1146 = vpop.f32.mrb[0].mxu0
    %v1147 = vadd.f32 %v763, %v1146
    %1148 = vmatprep.mubr.bf16.mxu0 %v713
    %1149 = vmatmul.mubr.bf16.gmra.mrb[0].mxu0 %v712
    %v1150 = vpop.f32.mrb[0].mxu0
    %v1151 = vadd.f32 %v759, %v1150
    %v1152 = vpop.f32.mrb[0].mxu0
    %v1153 = vadd.f32 %v763, %v1152
    %v1154 = vpop.f32.mrb[0].mxu0
    %v1155 = vadd.f32 %v759, %v1154
    %v1156 = vpop.f32.mrb[0].mxu0
    %v1157 = vadd.f32 %v763, %v1156
    %1158 = vmatprep.mubr.bf16.mxu0 %v715
    %1159 = vmatmul.mubr.bf16.gmra.mrb[0].mxu0 %v714
    %v1160 = vpop.f32.mrb[0].mxu0
    %v1161 = vadd.f32 %v759, %v1160
    %v1162 = vpop.f32.mrb[0].mxu0
    %v1163 = vadd.f32 %v763, %v1162
    %v1164 = vpop.f32.mrb[0].mxu0
    %v1165 = vadd.f32 %v759, %v1164
    %v1166 = vpop.f32.mrb[0].mxu0
    %v1167 = vadd.f32 %v763, %v1166
    %1168 = vmatprep.mubr.bf16.mxu0 %v717
    %1169 = vmatmul.mubr.bf16.gmra.mrb[0].mxu0 %v716
    %v1170 = vpop.f32.mrb[0].mxu0
    %v1171 = vadd.f32 %v759, %v1170
    %v1172 = vpop.f32.mrb[0].mxu0
    %v1173 = vadd.f32 %v763, %v1172
    %v1174 = vpop.f32.mrb[0].mxu0
    %v1175 = vadd.f32 %v759, %v1174
    %v1176 = vpop.f32.mrb[0].mxu0
    %v1177 = vadd.f32 %v763, %v1176
    %1178 = vmatprep.mubr.bf16.mxu0 %v719
    %1179 = vmatmul.mubr.bf16.gmra.mrb[0].mxu0 %v718
    %v1180 = vpop.f32.mrb[0].mxu0
    %v1181 = vadd.f32 %v759, %v1180
    %v1182 = vpop.f32.mrb[0].mxu0
    %v1183 = vadd.f32 %v763, %v1182
    %v1184 = vpop.f32.mrb[0].mxu0
    %v1185 = vadd.f32 %v759, %v1184
    %v1186 = vpop.f32.mrb[0].mxu0
    %v1187 = vadd.f32 %v763, %v1186
    %1188 = vmatprep.mubr.bf16.mxu0 %v721
    %1189 = vmatmul.mubr.bf16.gmra.mrb[0].mxu0 %v720
    %v1190 = vpop.f32.mrb[0].mxu0
    %v1191 = vadd.f32 %v759, %v1190
    %v1192 = vpop.f32.mrb[0].mxu0
    %v1193 = vadd.f32 %v763, %v1192
    %v1194 = vpop.f32.mrb[0].mxu0
    %v1195 = vadd.f32 %v759, %v1194
    %v1196 = vpop.f32.mrb[0].mxu0
    %v1197 = vadd.f32 %v763, %v1196
    %1198 = vdwg.mxu0
    %v1199 = vmax.f32 %v963, -20.0
    %v1200 = vmax.f32 %v967, -20.0
    %v1201 = vmax.f32 %v973, -20.0
    %v1202 = vmax.f32 %v977, -20.0
    %v1203 = vmax.f32 %v983, -20.0
    %v1204 = vmax.f32 %v987, -20.0
    %v1205 = vmax.f32 %v993, -20.0
    %v1206 = vmax.f32 %v997, -20.0
    %v1207 = vmax.f32 %v1003, -20.0
    %v1208 = vmax.f32 %v1007, -20.0
    %v1209 = vmax.f32 %v1013, -20.0
    %v1210 = vmax.f32 %v1017, -20.0
    %v1211 = vmax.f32 %v1023, -20.0
    %v1212 = vmax.f32 %v1027, -20.0
    %v1213 = vmax.f32 %v1033, -20.0
    %v1214 = vmax.f32 %v1037, -20.0
    %v1215 = vmax.f32 %v1043, -20.0
    %v1216 = vmax.f32 %v1047, -20.0
    %v1217 = vmax.f32 %v1053, -20.0
    %v1218 = vmax.f32 %v1057, -20.0
    %v1219 = vmax.f32 %v1063, -20.0
    %v1220 = vmax.f32 %v1067, -20.0
    %v1221 = vmax.f32 %v1073, -20.0
    %v1222 = vmax.f32 %v1077, -20.0
    %v1223 = vmax.f32 %v1083, -20.0
    %v1224 = vmax.f32 %v1087, -20.0
    %v1225 = vmax.f32 %v1093, -20.0
    %v1226 = vmax.f32 %v1097, -20.0
    %v1227 = vmax.f32 %v1103, -20.0
    %v1228 = vmax.f32 %v1107, -20.0
    %v1229 = vmax.f32 %v1113, -20.0
    %v1230 = vmax.f32 %v1117, -20.0
    %v1231 = vmax.f32 %v1123, -20.0
    %v1232 = vmax.f32 %v1127, -20.0
    %v1233 = vmax.f32 %v1133, -20.0
    %v1234 = vmax.f32 %v1137, -20.0
    %v1235 = vmax.f32 %v1143, -20.0
    %v1236 = vmax.f32 %v1147, -20.0
    %v1237 = vmax.f32 %v1153, -20.0
    %v1238 = vmax.f32 %v1157, -20.0
    %v1239 = vmax.f32 %v1163, -20.0
    %v1240 = vmax.f32 %v1167, -20.0
    %v1241 = vmax.f32 %v1173, -20.0
    %v1242 = vmax.f32 %v1177, -20.0
    %v1243 = vmax.f32 %v1183, -20.0
    %v1244 = vmax.f32 %v1187, -20.0
    %v1245 = vmax.f32 %v1193, -20.0
    %v1246 = vmax.f32 %v1197, -20.0
    %v1247 = vmin.f32 %v1199, 2.0
    %v1248 = vmin.f32 %v1200, 2.0
    %v1249 = vmin.f32 %v1201, 2.0
    %v1250 = vmin.f32 %v1202, 2.0
    %v1251 = vmin.f32 %v1203, 2.0
    %v1252 = vmin.f32 %v1204, 2.0
    %v1253 = vmin.f32 %v1205, 2.0
    %v1254 = vmin.f32 %v1206, 2.0
    %v1255 = vmin.f32 %v1207, 2.0
    %v1256 = vmin.f32 %v1208, 2.0
    %v1257 = vmin.f32 %v1209, 2.0
    %v1258 = vmin.f32 %v1210, 2.0
    %v1259 = vmin.f32 %v1211, 2.0
    %v1260 = vmin.f32 %v1212, 2.0
    %v1261 = vmin.f32 %v1213, 2.0
    %v1262 = vmin.f32 %v1214, 2.0
    %v1263 = vmin.f32 %v1215, 2.0
    %v1264 = vmin.f32 %v1216, 2.0
    %v1265 = vmin.f32 %v1217, 2.0
    %v1266 = vmin.f32 %v1218, 2.0
    %v1267 = vmin.f32 %v1219, 2.0
    %v1268 = vmin.f32 %v1220, 2.0
    %v1269 = vmin.f32 %v1221, 2.0
    %v1270 = vmin.f32 %v1222, 2.0
    %v1271 = vmin.f32 %v1223, 2.0
    %v1272 = vmin.f32 %v1224, 2.0
    %v1273 = vmin.f32 %v1225, 2.0
    %v1274 = vmin.f32 %v1226, 2.0
    %v1275 = vmin.f32 %v1227, 2.0
    %v1276 = vmin.f32 %v1228, 2.0
    %v1277 = vmin.f32 %v1229, 2.0
    %v1278 = vmin.f32 %v1230, 2.0
    %v1279 = vmin.f32 %v1231, 2.0
    %v1280 = vmin.f32 %v1232, 2.0
    %v1281 = vmin.f32 %v1233, 2.0
    %v1282 = vmin.f32 %v1234, 2.0
    %v1283 = vmin.f32 %v1235, 2.0
    %v1284 = vmin.f32 %v1236, 2.0
    %v1285 = vmin.f32 %v1237, 2.0
    %v1286 = vmin.f32 %v1238, 2.0
    %v1287 = vmin.f32 %v1239, 2.0
    %v1288 = vmin.f32 %v1240, 2.0
    %v1289 = vmin.f32 %v1241, 2.0
    %v1290 = vmin.f32 %v1242, 2.0
    %v1291 = vmin.f32 %v1243, 2.0
    %v1292 = vmin.f32 %v1244, 2.0
    %v1293 = vmin.f32 %v1245, 2.0
    %v1294 = vmin.f32 %v1246, 2.0
    %v1295 = vadd.f32 %v1247, 1.0
    %v1296 = vadd.f32 %v1248, 1.0
    %v1297 = vadd.f32 %v1249, 1.0
    %v1298 = vadd.f32 %v1250, 1.0
    %v1299 = vadd.f32 %v1251, 1.0
    %v1300 = vadd.f32 %v1252, 1.0
    %v1301 = vadd.f32 %v1253, 1.0
    %v1302 = vadd.f32 %v1254, 1.0
    %v1303 = vadd.f32 %v1255, 1.0
    %v1304 = vadd.f32 %v1256, 1.0
    %v1305 = vadd.f32 %v1257, 1.0
    %v1306 = vadd.f32 %v1258, 1.0
    %v1307 = vadd.f32 %v1259, 1.0
    %v1308 = vadd.f32 %v1260, 1.0
    %v1309 = vadd.f32 %v1261, 1.0
    %v1310 = vadd.f32 %v1262, 1.0
    %v1311 = vadd.f32 %v1263, 1.0
    %v1312 = vadd.f32 %v1264, 1.0
    %v1313 = vadd.f32 %v1265, 1.0
    %v1314 = vadd.f32 %v1266, 1.0
    %v1315 = vadd.f32 %v1267, 1.0
    %v1316 = vadd.f32 %v1268, 1.0
    %v1317 = vadd.f32 %v1269, 1.0
    %v1318 = vadd.f32 %v1270, 1.0
    %v1319 = vadd.f32 %v1271, 1.0
    %v1320 = vadd.f32 %v1272, 1.0
    %v1321 = vadd.f32 %v1273, 1.0
    %v1322 = vadd.f32 %v1274, 1.0
    %v1323 = vadd.f32 %v1275, 1.0
    %v1324 = vadd.f32 %v1276, 1.0
    %v1325 = vadd.f32 %v1277, 1.0
    %v1326 = vadd.f32 %v1278, 1.0
    %v1327 = vadd.f32 %v1279, 1.0
    %v1328 = vadd.f32 %v1280, 1.0
    %v1329 = vadd.f32 %v1281, 1.0
    %v1330 = vadd.f32 %v1282, 1.0
    %v1331 = vadd.f32 %v1283, 1.0
    %v1332 = vadd.f32 %v1284, 1.0
    %v1333 = vadd.f32 %v1285, 1.0
    %v1334 = vadd.f32 %v1286, 1.0
    %v1335 = vadd.f32 %v1287, 1.0
    %v1336 = vadd.f32 %v1288, 1.0
    %v1337 = vadd.f32 %v1289, 1.0
    %v1338 = vadd.f32 %v1290, 1.0
    %v1339 = vadd.f32 %v1291, 1.0
    %v1340 = vadd.f32 %v1292, 1.0
    %v1341 = vadd.f32 %v1293, 1.0
    %v1342 = vadd.f32 %v1294, 1.0
    %v1343 = vmul.f32 %v961, %v961
    %v1344 = vmul.f32 %v965, %v965
    %v1345 = vmul.f32 %v971, %v971
    %v1346 = vmul.f32 %v975, %v975
    %v1347 = vmul.f32 %v981, %v981
    %v1348 = vmul.f32 %v985, %v985
    %v1349 = vmul.f32 %v991, %v991
    %v1350 = vmul.f32 %v995, %v995
    %v1351 = vmul.f32 %v1001, %v1001
    %v1352 = vmul.f32 %v1005, %v1005
    %v1353 = vmul.f32 %v1011, %v1011
    %v1354 = vmul.f32 %v1015, %v1015
    %v1355 = vmul.f32 %v1021, %v1021
    %v1356 = vmul.f32 %v1025, %v1025
    %v1357 = vmul.f32 %v1031, %v1031
    %v1358 = vmul.f32 %v1035, %v1035
    %v1359 = vmul.f32 %v1041, %v1041
    %v1360 = vmul.f32 %v1045, %v1045
    %v1361 = vmul.f32 %v1051, %v1051
    %v1362 = vmul.f32 %v1055, %v1055
    %v1363 = vmul.f32 %v1061, %v1061
    %v1364 = vmul.f32 %v1065, %v1065
    %v1365 = vmul.f32 %v1071, %v1071
    %v1366 = vmul.f32 %v1075, %v1075
    %v1367 = vmul.f32 %v1081, %v1081
    %v1368 = vmul.f32 %v1085, %v1085
    %v1369 = vmul.f32 %v1091, %v1091
    %v1370 = vmul.f32 %v1095, %v1095
    %v1371 = vmul.f32 %v1101, %v1101
    %v1372 = vmul.f32 %v1105, %v1105
    %v1373 = vmul.f32 %v1111, %v1111
    %v1374 = vmul.f32 %v1115, %v1115
    %v1375 = vmul.f32 %v1121, %v1121
    %v1376 = vmul.f32 %v1125, %v1125
    %v1377 = vmul.f32 %v1131, %v1131
    %v1378 = vmul.f32 %v1135, %v1135
    %v1379 = vmul.f32 %v1141, %v1141
    %v1380 = vmul.f32 %v1145, %v1145
    %v1381 = vmul.f32 %v1151, %v1151
    %v1382 = vmul.f32 %v1155, %v1155
    %v1383 = vmul.f32 %v1161, %v1161
    %v1384 = vmul.f32 %v1165, %v1165
    %v1385 = vmul.f32 %v1171, %v1171
    %v1386 = vmul.f32 %v1175, %v1175
    %v1387 = vmul.f32 %v1181, %v1181
    %v1388 = vmul.f32 %v1185, %v1185
    %v1389 = vmul.f32 %v1191, %v1191
    %v1390 = vmul.f32 %v1195, %v1195
    %v1391 = vsub.f32 %v1295, %v1343
    %v1392 = vsub.f32 %v1296, %v1344
    %v1393 = vsub.f32 %v1297, %v1345
    %v1394 = vsub.f32 %v1298, %v1346
    %v1395 = vsub.f32 %v1299, %v1347
    %v1396 = vsub.f32 %v1300, %v1348
    %v1397 = vsub.f32 %v1301, %v1349
    %v1398 = vsub.f32 %v1302, %v1350
    %v1399 = vsub.f32 %v1303, %v1351
    %v1400 = vsub.f32 %v1304, %v1352
    %v1401 = vsub.f32 %v1305, %v1353
    %v1402 = vsub.f32 %v1306, %v1354
    %v1403 = vsub.f32 %v1307, %v1355
    %v1404 = vsub.f32 %v1308, %v1356
    %v1405 = vsub.f32 %v1309, %v1357
    %v1406 = vsub.f32 %v1310, %v1358
    %v1407 = vsub.f32 %v1311, %v1359
    %v1408 = vsub.f32 %v1312, %v1360
    %v1409 = vsub.f32 %v1313, %v1361
    %v1410 = vsub.f32 %v1314, %v1362
    %v1411 = vsub.f32 %v1315, %v1363
    %v1412 = vsub.f32 %v1316, %v1364
    %v1413 = vsub.f32 %v1317, %v1365
    %v1414 = vsub.f32 %v1318, %v1366
    %v1415 = vsub.f32 %v1319, %v1367
    %v1416 = vsub.f32 %v1320, %v1368
    %v1417 = vsub.f32 %v1321, %v1369
    %v1418 = vsub.f32 %v1322, %v1370
    %v1419 = vsub.f32 %v1323, %v1371
    %v1420 = vsub.f32 %v1324, %v1372
    %v1421 = vsub.f32 %v1325, %v1373
    %v1422 = vsub.f32 %v1326, %v1374
    %v1423 = vsub.f32 %v1327, %v1375
    %v1424 = vsub.f32 %v1328, %v1376
    %v1425 = vsub.f32 %v1329, %v1377
    %v1426 = vsub.f32 %v1330, %v1378
    %v1427 = vsub.f32 %v1331, %v1379
    %v1428 = vsub.f32 %v1332, %v1380
    %v1429 = vsub.f32 %v1333, %v1381
    %v1430 = vsub.f32 %v1334, %v1382
    %v1431 = vsub.f32 %v1335, %v1383
    %v1432 = vsub.f32 %v1336, %v1384
    %v1433 = vsub.f32 %v1337, %v1385
    %v1434 = vsub.f32 %v1338, %v1386
    %v1435 = vsub.f32 %v1339, %v1387
    %v1436 = vsub.f32 %v1340, %v1388
    %v1437 = vsub.f32 %v1341, %v1389
    %v1438 = vsub.f32 %v1342, %v1390
    %v1439 = vmul.f32 %v1247, 1.442695
    %v1440 = vpow.pop %v1439
    %v1441 = vmul.f32 %v1248, 1.442695
    %v1442 = vpow.pop %v1441
    %v1443 = vmul.f32 %v1249, 1.442695
    %v1444 = vpow.pop %v1443
    %v1445 = vmul.f32 %v1250, 1.442695
    %v1446 = vpow.pop %v1445
    %v1447 = vmul.f32 %v1251, 1.442695
    %v1448 = vpow.pop %v1447
    %v1449 = vmul.f32 %v1252, 1.442695
    %v1450 = vpow.pop %v1449
    %v1451 = vmul.f32 %v1253, 1.442695
    %v1452 = vpow.pop %v1451
    %v1453 = vmul.f32 %v1254, 1.442695
    %v1454 = vpow.pop %v1453
    %v1455 = vmul.f32 %v1255, 1.442695
    %v1456 = vpow.pop %v1455
    %v1457 = vmul.f32 %v1256, 1.442695
    %v1458 = vpow.pop %v1457
    %v1459 = vmul.f32 %v1257, 1.442695
    %v1460 = vpow.pop %v1459
    %v1461 = vmul.f32 %v1258, 1.442695
    %v1462 = vpow.pop %v1461
    %v1463 = vmul.f32 %v1259, 1.442695
    %v1464 = vpow.pop %v1463
    %v1465 = vmul.f32 %v1260, 1.442695
    %v1466 = vpow.pop %v1465
    %v1467 = vmul.f32 %v1261, 1.442695
    %v1468 = vpow.pop %v1467
    %v1469 = vmul.f32 %v1262, 1.442695
    %v1470 = vpow.pop %v1469
    %v1471 = vmul.f32 %v1263, 1.442695
    %v1472 = vpow.pop %v1471
    %v1473 = vmul.f32 %v1264, 1.442695
    %v1474 = vpow.pop %v1473
    %v1475 = vmul.f32 %v1265, 1.442695
    %v1476 = vpow.pop %v1475
    %v1477 = vmul.f32 %v1266, 1.442695
    %v1478 = vpow.pop %v1477
    %v1479 = vmul.f32 %v1267, 1.442695
    %v1480 = vpow.pop %v1479
    %v1481 = vmul.f32 %v1268, 1.442695
    %v1482 = vpow.pop %v1481
    %v1483 = vmul.f32 %v1269, 1.442695
    %v1484 = vpow.pop %v1483
    %v1485 = vmul.f32 %v1270, 1.442695
    %v1486 = vpow.pop %v1485
    %v1487 = vmul.f32 %v1271, 1.442695
    %v1488 = vpow.pop %v1487
    %v1489 = vmul.f32 %v1272, 1.442695
    %v1490 = vpow.pop %v1489
    %v1491 = vmul.f32 %v1273, 1.442695
    %v1492 = vpow.pop %v1491
    %v1493 = vmul.f32 %v1274, 1.442695
    %v1494 = vpow.pop %v1493
    %v1495 = vmul.f32 %v1275, 1.442695
    %v1496 = vpow.pop %v1495
    %v1497 = vmul.f32 %v1276, 1.442695
    %v1498 = vpow.pop %v1497
    %v1499 = vmul.f32 %v1277, 1.442695
    %v1500 = vpow.pop %v1499
    %v1501 = vmul.f32 %v1278, 1.442695
    %v1502 = vpow.pop %v1501
    %v1503 = vmul.f32 %v1279, 1.442695
    %v1504 = vpow.pop %v1503
    %v1505 = vmul.f32 %v1280, 1.442695
    %v1506 = vpow.pop %v1505
    %v1507 = vmul.f32 %v1281, 1.442695
    %v1508 = vpow.pop %v1507
    %v1509 = vmul.f32 %v1282, 1.442695
    %v1510 = vpow.pop %v1509
    %v1511 = vmul.f32 %v1283, 1.442695
    %v1512 = vpow.pop %v1511
    %v1513 = vmul.f32 %v1284, 1.442695
    %v1514 = vpow.pop %v1513
    %v1515 = vmul.f32 %v1285, 1.442695
    %v1516 = vpow.pop %v1515
    %v1517 = vmul.f32 %v1286, 1.442695
    %v1518 = vpow.pop %v1517
    %v1519 = vmul.f32 %v1287, 1.442695
    %v1520 = vpow.pop %v1519
    %v1521 = vmul.f32 %v1288, 1.442695
    %v1522 = vpow.pop %v1521
    %v1523 = vmul.f32 %v1289, 1.442695
    %v1524 = vpow.pop %v1523
    %v1525 = vmul.f32 %v1290, 1.442695
    %v1526 = vpow.pop %v1525
    %v1527 = vmul.f32 %v1291, 1.442695
    %v1528 = vpow.pop %v1527
    %v1529 = vmul.f32 %v1292, 1.442695
    %v1530 = vpow.pop %v1529
    %v1531 = vmul.f32 %v1293, 1.442695
    %v1532 = vpow.pop %v1531
    %v1533 = vmul.f32 %v1294, 1.442695
    %v1534 = vpow.pop %v1533
    %v1535 = vsub.f32 %v1391, %v1440
    %v1536 = vsub.f32 %v1392, %v1442
    %v1537 = vsub.f32 %v1393, %v1444
    %v1538 = vsub.f32 %v1394, %v1446
    %v1539 = vsub.f32 %v1395, %v1448
    %v1540 = vsub.f32 %v1396, %v1450
    %v1541 = vsub.f32 %v1397, %v1452
    %v1542 = vsub.f32 %v1398, %v1454
    %v1543 = vsub.f32 %v1399, %v1456
    %v1544 = vsub.f32 %v1400, %v1458
    %v1545 = vsub.f32 %v1401, %v1460
    %v1546 = vsub.f32 %v1402, %v1462
    %v1547 = vsub.f32 %v1403, %v1464
    %v1548 = vsub.f32 %v1404, %v1466
    %v1549 = vsub.f32 %v1405, %v1468
    %v1550 = vsub.f32 %v1406, %v1470
    %v1551 = vsub.f32 %v1407, %v1472
    %v1552 = vsub.f32 %v1408, %v1474
    %v1553 = vsub.f32 %v1409, %v1476
    %v1554 = vsub.f32 %v1410, %v1478
    %v1555 = vsub.f32 %v1411, %v1480
    %v1556 = vsub.f32 %v1412, %v1482
    %v1557 = vsub.f32 %v1413, %v1484
    %v1558 = vsub.f32 %v1414, %v1486
    %v1559 = vsub.f32 %v1415, %v1488
    %v1560 = vsub.f32 %v1416, %v1490
    %v1561 = vsub.f32 %v1417, %v1492
    %v1562 = vsub.f32 %v1418, %v1494
    %v1563 = vsub.f32 %v1419, %v1496
    %v1564 = vsub.f32 %v1420, %v1498
    %v1565 = vsub.f32 %v1421, %v1500
    %v1566 = vsub.f32 %v1422, %v1502
    %v1567 = vsub.f32 %v1423, %v1504
    %v1568 = vsub.f32 %v1424, %v1506
    %v1569 = vsub.f32 %v1425, %v1508
    %v1570 = vsub.f32 %v1426, %v1510
    %v1571 = vsub.f32 %v1427, %v1512
    %v1572 = vsub.f32 %v1428, %v1514
    %v1573 = vsub.f32 %v1429, %v1516
    %v1574 = vsub.f32 %v1430, %v1518
    %v1575 = vsub.f32 %v1431, %v1520
    %v1576 = vsub.f32 %v1432, %v1522
    %v1577 = vsub.f32 %v1433, %v1524
    %v1578 = vsub.f32 %v1434, %v1526
    %v1579 = vsub.f32 %v1435, %v1528
    %v1580 = vsub.f32 %v1436, %v1530
    %v1581 = vsub.f32 %v1437, %v1532
    %v1582 = vsub.f32 %v1438, %v1534
    %1583 = vmatprep.subr.mxu0 0.0
    %1584 = vmatpush1.msra.mxu0 1.0
    %1585 = vmatprep.subr.mxu0 0.0
    %1586 = vmatpush1.msra.mxu0 1.0
    %1587 = vmatprep.subr.mxu0 0.0
    %1588 = vmatpush1.msra.mxu0 1.0
    %1589 = vmatprep.subr.mxu0 0.0
    %1590 = vmatpush1.msra.mxu0 1.0
    %1591 = vmatprep.subr.mxu0 0.0
    %1592 = vmatpush1.msra.mxu0 1.0
    %1593 = vmatprep.subr.mxu0 0.0
    %1594 = vmatpush1.msra.mxu0 1.0
    %1595 = vmatprep.subr.mxu0 0.0
    %1596 = vmatpush1.msra.mxu0 1.0
    %1597 = vmatprep.subr.mxu0 0.0
    %1598 = vmatpush1.msra.mxu0 1.0
    %1599 = vmatprep.subr.mxu0 0.0
    %1600 = vmatpush1.msra.mxu0 1.0
    %1601 = vmatprep.subr.mxu0 0.0
    %1602 = vmatpush1.msra.mxu0 1.0
    %1603 = vmatprep.subr.mxu0 0.0
    %1604 = vmatpush1.msra.mxu0 1.0
    %1605 = vmatprep.subr.mxu0 0.0
    %1606 = vmatpush1.msra.mxu0 1.0
    %1607 = vmatprep.subr.mxu0 0.0
    %1608 = vmatpush1.msra.mxu0 1.0
    %1609 = vmatprep.subr.mxu0 0.0
    %1610 = vmatpush1.msra.mxu0 1.0
    %1611 = vmatprep.subr.mxu0 0.0
    %1612 = vmatpush1.msra.mxu0 1.0
    %1613 = vmatprep.subr.mxu0 0.0
    %1614 = vmatpush1.msra.mxu0 1.0
    %1615 = vmatprep.subr.mxu0 0.0
    %1616 = vmatpush1.msra.mxu0 0.0
    %1617 = vmatprep.subr.mxu0 0.0
    %1618 = vmatpush1.msra.mxu0 0.0
    %1619 = vmatprep.subr.mxu0 0.0
    %1620 = vmatpush1.msra.mxu0 0.0
    %1621 = vmatprep.subr.mxu0 0.0
    %1622 = vmatpush1.msra.mxu0 0.0
    %1623 = vmatprep.subr.mxu0 0.0
    %1624 = vmatpush1.msra.mxu0 0.0
    %1625 = vmatprep.subr.mxu0 0.0
    %1626 = vmatpush1.msra.mxu0 0.0
    %1627 = vmatprep.subr.mxu0 0.0
    %1628 = vmatpush1.msra.mxu0 0.0
    %1629 = vmatprep.subr.mxu0 0.0
    %1630 = vmatpush1.msra.mxu0 0.0
    %1631 = vmatprep.subr.mxu0 0.0
    %1632 = vmatpush1.msra.mxu0 0.0
    %1633 = vmatprep.subr.mxu0 0.0
    %1634 = vmatpush1.msra.mxu0 0.0
    %1635 = vmatprep.subr.mxu0 0.0
    %1636 = vmatpush1.msra.mxu0 0.0
    %1637 = vmatprep.subr.mxu0 0.0
    %1638 = vmatpush1.msra.mxu0 0.0
    %1639 = vmatprep.subr.mxu0 0.0
    %1640 = vmatpush1.msra.mxu0 0.0
    %1641 = vmatprep.subr.mxu0 0.0
    %1642 = vmatpush1.msra.mxu0 0.0
    %1643 = vmatprep.subr.mxu0 0.0
    %1644 = vmatpush1.msra.mxu0 0.0
    %1645 = vmatprep.subr.mxu0 0.0
    %1646 = vmatpush1.msra.mxu0 0.0
    %1647 = vmatprep.mubr.f32.mxu0 0.0
    %1648 = vmatmul.mubr.f32.gmra.mrb[0].mxu0 %v1535
    %v1649 = vpop.f32.mrb[0].mxu0
    %v1650 = vadd.f32 0.0, %v1649
    %v1651 = vpop.f32.mrb[0].mxu0
    %1652 = vmatprep.mubr.f32.mxu0 0.0
    %1653 = vmatmul.mubr.f32.gmra.mrb[0].mxu0 %v1536
    %v1654 = vpop.f32.mrb[0].mxu0
    %v1655 = vadd.f32 0.0, %v1654
    %v1656 = vpop.f32.mrb[0].mxu0
    %1657 = vmatprep.mubr.f32.mxu0 0.0
    %1658 = vmatmul.mubr.f32.gmra.mrb[0].mxu0 %v1537
    %v1659 = vpop.f32.mrb[0].mxu0
    %v1660 = vadd.f32 0.0, %v1659
    %v1661 = vpop.f32.mrb[0].mxu0
    %1662 = vmatprep.mubr.f32.mxu0 0.0
    %1663 = vmatmul.mubr.f32.gmra.mrb[0].mxu0 %v1538
    %v1664 = vpop.f32.mrb[0].mxu0
    %v1665 = vadd.f32 0.0, %v1664
    %v1666 = vpop.f32.mrb[0].mxu0
    %1667 = vmatprep.mubr.f32.mxu0 0.0
    %1668 = vmatmul.mubr.f32.gmra.mrb[0].mxu0 %v1539
    %v1669 = vpop.f32.mrb[0].mxu0
    %v1670 = vadd.f32 0.0, %v1669
    %v1671 = vpop.f32.mrb[0].mxu0
    %1672 = vmatprep.mubr.f32.mxu0 0.0
    %1673 = vmatmul.mubr.f32.gmra.mrb[0].mxu0 %v1540
    %v1674 = vpop.f32.mrb[0].mxu0
    %v1675 = vadd.f32 0.0, %v1674
    %v1676 = vpop.f32.mrb[0].mxu0
    %1677 = vmatprep.mubr.f32.mxu0 0.0
    %1678 = vmatmul.mubr.f32.gmra.mrb[0].mxu0 %v1541
    %v1679 = vpop.f32.mrb[0].mxu0
    %v1680 = vadd.f32 0.0, %v1679
    %v1681 = vpop.f32.mrb[0].mxu0
    %1682 = vmatprep.mubr.f32.mxu0 0.0
    %1683 = vmatmul.mubr.f32.gmra.mrb[0].mxu0 %v1542
    %v1684 = vpop.f32.mrb[0].mxu0
    %v1685 = vadd.f32 0.0, %v1684
    %v1686 = vpop.f32.mrb[0].mxu0
    %1687 = vmatprep.mubr.f32.mxu0 0.0
    %1688 = vmatmul.mubr.f32.gmra.mrb[0].mxu0 %v1543
    %v1689 = vpop.f32.mrb[0].mxu0
    %v1690 = vadd.f32 0.0, %v1689
    %v1691 = vpop.f32.mrb[0].mxu0
    %1692 = vmatprep.mubr.f32.mxu0 0.0
    %1693 = vmatmul.mubr.f32.gmra.mrb[0].mxu0 %v1544
    %v1694 = vpop.f32.mrb[0].mxu0
    %v1695 = vadd.f32 0.0, %v1694
    %v1696 = vpop.f32.mrb[0].mxu0
    %1697 = vmatprep.mubr.f32.mxu0 0.0
    %1698 = vmatmul.mubr.f32.gmra.mrb[0].mxu0 %v1545
    %v1699 = vpop.f32.mrb[0].mxu0
    %v1700 = vadd.f32 0.0, %v1699
    %v1701 = vpop.f32.mrb[0].mxu0
    %1702 = vmatprep.mubr.f32.mxu0 0.0
    %1703 = vmatmul.mubr.f32.gmra.mrb[0].mxu0 %v1546
    %v1704 = vpop.f32.mrb[0].mxu0
    %v1705 = vadd.f32 0.0, %v1704
    %v1706 = vpop.f32.mrb[0].mxu0
    %1707 = vmatprep.mubr.f32.mxu0 0.0
    %1708 = vmatmul.mubr.f32.gmra.mrb[0].mxu0 %v1547
    %v1709 = vpop.f32.mrb[0].mxu0
    %v1710 = vadd.f32 0.0, %v1709
    %v1711 = vpop.f32.mrb[0].mxu0
    %1712 = vmatprep.mubr.f32.mxu0 0.0
    %1713 = vmatmul.mubr.f32.gmra.mrb[0].mxu0 %v1548
    %v1714 = vpop.f32.mrb[0].mxu0
    %v1715 = vadd.f32 0.0, %v1714
    %v1716 = vpop.f32.mrb[0].mxu0
    %1717 = vmatprep.mubr.f32.mxu0 0.0
    %1718 = vmatmul.mubr.f32.gmra.mrb[0].mxu0 %v1549
    %v1719 = vpop.f32.mrb[0].mxu0
    %v1720 = vadd.f32 0.0, %v1719
    %v1721 = vpop.f32.mrb[0].mxu0
    %1722 = vmatprep.mubr.f32.mxu0 0.0
    %1723 = vmatmul.mubr.f32.gmra.mrb[0].mxu0 %v1550
    %v1724 = vpop.f32.mrb[0].mxu0
    %v1725 = vadd.f32 0.0, %v1724
    %v1726 = vpop.f32.mrb[0].mxu0
    %1727 = vmatprep.mubr.f32.mxu0 0.0
    %1728 = vmatmul.mubr.f32.gmra.mrb[0].mxu0 %v1551
    %v1729 = vpop.f32.mrb[0].mxu0
    %v1730 = vadd.f32 0.0, %v1729
    %v1731 = vpop.f32.mrb[0].mxu0
    %1732 = vmatprep.mubr.f32.mxu0 0.0
    %1733 = vmatmul.mubr.f32.gmra.mrb[0].mxu0 %v1552
    %v1734 = vpop.f32.mrb[0].mxu0
    %v1735 = vadd.f32 0.0, %v1734
    %v1736 = vpop.f32.mrb[0].mxu0
    %1737 = vmatprep.mubr.f32.mxu0 0.0
    %1738 = vmatmul.mubr.f32.gmra.mrb[0].mxu0 %v1553
    %v1739 = vpop.f32.mrb[0].mxu0
    %v1740 = vadd.f32 0.0, %v1739
    %v1741 = vpop.f32.mrb[0].mxu0
    %1742 = vmatprep.mubr.f32.mxu0 0.0
    %1743 = vmatmul.mubr.f32.gmra.mrb[0].mxu0 %v1554
    %v1744 = vpop.f32.mrb[0].mxu0
    %v1745 = vadd.f32 0.0, %v1744
    %v1746 = vpop.f32.mrb[0].mxu0
    %1747 = vmatprep.mubr.f32.mxu0 0.0
    %1748 = vmatmul.mubr.f32.gmra.mrb[0].mxu0 %v1555
    %v1749 = vpop.f32.mrb[0].mxu0
    %v1750 = vadd.f32 0.0, %v1749
    %v1751 = vpop.f32.mrb[0].mxu0
    %1752 = vmatprep.mubr.f32.mxu0 0.0
    %1753 = vmatmul.mubr.f32.gmra.mrb[0].mxu0 %v1556
    %v1754 = vpop.f32.mrb[0].mxu0
    %v1755 = vadd.f32 0.0, %v1754
    %v1756 = vpop.f32.mrb[0].mxu0
    %1757 = vmatprep.mubr.f32.mxu0 0.0
    %1758 = vmatmul.mubr.f32.gmra.mrb[0].mxu0 %v1557
    %v1759 = vpop.f32.mrb[0].mxu0
    %v1760 = vadd.f32 0.0, %v1759
    %v1761 = vpop.f32.mrb[0].mxu0
    %1762 = vmatprep.mubr.f32.mxu0 0.0
    %1763 = vmatmul.mubr.f32.gmra.mrb[0].mxu0 %v1558
    %v1764 = vpop.f32.mrb[0].mxu0
    %v1765 = vadd.f32 0.0, %v1764
    %v1766 = vpop.f32.mrb[0].mxu0
    %1767 = vmatprep.mubr.f32.mxu0 0.0
    %1768 = vmatmul.mubr.f32.gmra.mrb[0].mxu0 %v1559
    %v1769 = vpop.f32.mrb[0].mxu0
    %v1770 = vadd.f32 0.0, %v1769
    %v1771 = vpop.f32.mrb[0].mxu0
    %1772 = vmatprep.mubr.f32.mxu0 0.0
    %1773 = vmatmul.mubr.f32.gmra.mrb[0].mxu0 %v1560
    %v1774 = vpop.f32.mrb[0].mxu0
    %v1775 = vadd.f32 0.0, %v1774
    %v1776 = vpop.f32.mrb[0].mxu0
    %1777 = vmatprep.mubr.f32.mxu0 0.0
    %1778 = vmatmul.mubr.f32.gmra.mrb[0].mxu0 %v1561
    %v1779 = vpop.f32.mrb[0].mxu0
    %v1780 = vadd.f32 0.0, %v1779
    %v1781 = vpop.f32.mrb[0].mxu0
    %1782 = vmatprep.mubr.f32.mxu0 0.0
    %1783 = vmatmul.mubr.f32.gmra.mrb[0].mxu0 %v1562
    %v1784 = vpop.f32.mrb[0].mxu0
    %v1785 = vadd.f32 0.0, %v1784
    %v1786 = vpop.f32.mrb[0].mxu0
    %1787 = vmatprep.mubr.f32.mxu0 0.0
    %1788 = vmatmul.mubr.f32.gmra.mrb[0].mxu0 %v1563
    %v1789 = vpop.f32.mrb[0].mxu0
    %v1790 = vadd.f32 0.0, %v1789
    %v1791 = vpop.f32.mrb[0].mxu0
    %1792 = vmatprep.mubr.f32.mxu0 0.0
    %1793 = vmatmul.mubr.f32.gmra.mrb[0].mxu0 %v1564
    %v1794 = vpop.f32.mrb[0].mxu0
    %v1795 = vadd.f32 0.0, %v1794
    %v1796 = vpop.f32.mrb[0].mxu0
    %1797 = vmatprep.mubr.f32.mxu0 0.0
    %1798 = vmatmul.mubr.f32.gmra.mrb[0].mxu0 %v1565
    %v1799 = vpop.f32.mrb[0].mxu0
    %v1800 = vadd.f32 0.0, %v1799
    %v1801 = vpop.f32.mrb[0].mxu0
    %1802 = vmatprep.mubr.f32.mxu0 0.0
    %1803 = vmatmul.mubr.f32.gmra.mrb[0].mxu0 %v1566
    %v1804 = vpop.f32.mrb[0].mxu0
    %v1805 = vadd.f32 0.0, %v1804
    %v1806 = vpop.f32.mrb[0].mxu0
    %1807 = vmatprep.mubr.f32.mxu0 0.0
    %1808 = vmatmul.mubr.f32.gmra.mrb[0].mxu0 %v1567
    %v1809 = vpop.f32.mrb[0].mxu0
    %v1810 = vadd.f32 0.0, %v1809
    %v1811 = vpop.f32.mrb[0].mxu0
    %1812 = vmatprep.mubr.f32.mxu0 0.0
    %1813 = vmatmul.mubr.f32.gmra.mrb[0].mxu0 %v1568
    %v1814 = vpop.f32.mrb[0].mxu0
    %v1815 = vadd.f32 0.0, %v1814
    %v1816 = vpop.f32.mrb[0].mxu0
    %1817 = vmatprep.mubr.f32.mxu0 0.0
    %1818 = vmatmul.mubr.f32.gmra.mrb[0].mxu0 %v1569
    %v1819 = vpop.f32.mrb[0].mxu0
    %v1820 = vadd.f32 0.0, %v1819
    %v1821 = vpop.f32.mrb[0].mxu0
    %1822 = vmatprep.mubr.f32.mxu0 0.0
    %1823 = vmatmul.mubr.f32.gmra.mrb[0].mxu0 %v1570
    %v1824 = vpop.f32.mrb[0].mxu0
    %v1825 = vadd.f32 0.0, %v1824
    %v1826 = vpop.f32.mrb[0].mxu0
    %1827 = vmatprep.mubr.f32.mxu0 0.0
    %1828 = vmatmul.mubr.f32.gmra.mrb[0].mxu0 %v1571
    %v1829 = vpop.f32.mrb[0].mxu0
    %v1830 = vadd.f32 0.0, %v1829
    %v1831 = vpop.f32.mrb[0].mxu0
    %1832 = vmatprep.mubr.f32.mxu0 0.0
    %1833 = vmatmul.mubr.f32.gmra.mrb[0].mxu0 %v1572
    %v1834 = vpop.f32.mrb[0].mxu0
    %v1835 = vadd.f32 0.0, %v1834
    %v1836 = vpop.f32.mrb[0].mxu0
    %1837 = vmatprep.mubr.f32.mxu0 0.0
    %1838 = vmatmul.mubr.f32.gmra.mrb[0].mxu0 %v1573
    %v1839 = vpop.f32.mrb[0].mxu0
    %v1840 = vadd.f32 0.0, %v1839
    %v1841 = vpop.f32.mrb[0].mxu0
    %1842 = vmatprep.mubr.f32.mxu0 0.0
    %1843 = vmatmul.mubr.f32.gmra.mrb[0].mxu0 %v1574
    %v1844 = vpop.f32.mrb[0].mxu0
    %v1845 = vadd.f32 0.0, %v1844
    %v1846 = vpop.f32.mrb[0].mxu0
    %1847 = vmatprep.mubr.f32.mxu0 0.0
    %1848 = vmatmul.mubr.f32.gmra.mrb[0].mxu0 %v1575
    %v1849 = vpop.f32.mrb[0].mxu0
    %v1850 = vadd.f32 0.0, %v1849
    %v1851 = vpop.f32.mrb[0].mxu0
    %1852 = vmatprep.mubr.f32.mxu0 0.0
    %1853 = vmatmul.mubr.f32.gmra.mrb[0].mxu0 %v1576
    %v1854 = vpop.f32.mrb[0].mxu0
    %v1855 = vadd.f32 0.0, %v1854
    %v1856 = vpop.f32.mrb[0].mxu0
    %1857 = vmatprep.mubr.f32.mxu0 0.0
    %1858 = vmatmul.mubr.f32.gmra.mrb[0].mxu0 %v1577
    %v1859 = vpop.f32.mrb[0].mxu0
    %v1860 = vadd.f32 0.0, %v1859
    %v1861 = vpop.f32.mrb[0].mxu0
    %1862 = vmatprep.mubr.f32.mxu0 0.0
    %1863 = vmatmul.mubr.f32.gmra.mrb[0].mxu0 %v1578
    %v1864 = vpop.f32.mrb[0].mxu0
    %v1865 = vadd.f32 0.0, %v1864
    %v1866 = vpop.f32.mrb[0].mxu0
    %1867 = vmatprep.mubr.f32.mxu0 0.0
    %1868 = vmatmul.mubr.f32.gmra.mrb[0].mxu0 %v1579
    %v1869 = vpop.f32.mrb[0].mxu0
    %v1870 = vadd.f32 0.0, %v1869
    %v1871 = vpop.f32.mrb[0].mxu0
    %1872 = vmatprep.mubr.f32.mxu0 0.0
    %1873 = vmatmul.mubr.f32.gmra.mrb[0].mxu0 %v1580
    %v1874 = vpop.f32.mrb[0].mxu0
    %v1875 = vadd.f32 0.0, %v1874
    %v1876 = vpop.f32.mrb[0].mxu0
    %1877 = vmatprep.mubr.f32.mxu0 0.0
    %1878 = vmatmul.mubr.f32.gmra.mrb[0].mxu0 %v1581
    %v1879 = vpop.f32.mrb[0].mxu0
    %v1880 = vadd.f32 0.0, %v1879
    %v1881 = vpop.f32.mrb[0].mxu0
    %1882 = vmatprep.mubr.f32.mxu0 0.0
    %1883 = vmatmul.mubr.f32.gmra.mrb[0].mxu0 %v1582
    %v1884 = vpop.f32.mrb[0].mxu0
    %v1885 = vadd.f32 0.0, %v1884
    %v1886 = vpop.f32.mrb[0].mxu0
    %1887 = vdwg.mxu0
    %v1888 = vmul.f32 %v1650, -0.05
    %v1889 = vmul.f32 %v1655, -0.05
    %v1890 = vmul.f32 %v1660, -0.05
    %v1891 = vmul.f32 %v1665, -0.05
    %v1892 = vmul.f32 %v1670, -0.05
    %v1893 = vmul.f32 %v1675, -0.05
    %v1894 = vmul.f32 %v1680, -0.05
    %v1895 = vmul.f32 %v1685, -0.05
    %v1896 = vmul.f32 %v1690, -0.05
    %v1897 = vmul.f32 %v1695, -0.05
    %v1898 = vmul.f32 %v1700, -0.05
    %v1899 = vmul.f32 %v1705, -0.05
    %v1900 = vmul.f32 %v1710, -0.05
    %v1901 = vmul.f32 %v1715, -0.05
    %v1902 = vmul.f32 %v1720, -0.05
    %v1903 = vmul.f32 %v1725, -0.05
    %v1904 = vmul.f32 %v1730, -0.05
    %v1905 = vmul.f32 %v1735, -0.05
    %v1906 = vmul.f32 %v1740, -0.05
    %v1907 = vmul.f32 %v1745, -0.05
    %v1908 = vmul.f32 %v1750, -0.05
    %v1909 = vmul.f32 %v1755, -0.05
    %v1910 = vmul.f32 %v1760, -0.05
    %v1911 = vmul.f32 %v1765, -0.05
    %v1912 = vmul.f32 %v1770, -0.05
    %v1913 = vmul.f32 %v1775, -0.05
    %v1914 = vmul.f32 %v1780, -0.05
    %v1915 = vmul.f32 %v1785, -0.05
    %v1916 = vmul.f32 %v1790, -0.05
    %v1917 = vmul.f32 %v1795, -0.05
    %v1918 = vmul.f32 %v1800, -0.05
    %v1919 = vmul.f32 %v1805, -0.05
    %v1920 = vmul.f32 %v1810, -0.05
    %v1921 = vmul.f32 %v1815, -0.05
    %v1922 = vmul.f32 %v1820, -0.05
    %v1923 = vmul.f32 %v1825, -0.05
    %v1924 = vmul.f32 %v1830, -0.05
    %v1925 = vmul.f32 %v1835, -0.05
    %v1926 = vmul.f32 %v1840, -0.05
    %v1927 = vmul.f32 %v1845, -0.05
    %v1928 = vmul.f32 %v1850, -0.05
    %v1929 = vmul.f32 %v1855, -0.05
    %v1930 = vmul.f32 %v1860, -0.05
    %v1931 = vmul.f32 %v1865, -0.05
    %v1932 = vmul.f32 %v1870, -0.05
    %v1933 = vmul.f32 %v1875, -0.05
    %v1934 = vmul.f32 %v1880, -0.05
    %v1935 = vmul.f32 %v1885, -0.05
    %vm1936 = vcmask 7168
    %1937 = vst.msk [vmem:[%s5] sm:$0xff] %vm1936, %v1888
    %1938 = vst.msk [vmem:[%s5 + $0x8] sm:$0xff] %vm1936, %v1889
    %1939 = vst.msk [vmem:[%s5 + $0x10] sm:$0xff] %vm1936, %v1890
    %1940 = vst.msk [vmem:[%s5 + $0x18] sm:$0xff] %vm1936, %v1891
    %1941 = vst.msk [vmem:[%s5 + $0x20] sm:$0xff] %vm1936, %v1892
    %1942 = vst.msk [vmem:[%s5 + $0x28] sm:$0xff] %vm1936, %v1893
    %1943 = vst.msk [vmem:[%s5 + $0x30] sm:$0xff] %vm1936, %v1894
    %1944 = vst.msk [vmem:[%s5 + $0x38] sm:$0xff] %vm1936, %v1895
    %1945 = vst.msk [vmem:[%s5 + $0x40] sm:$0xff] %vm1936, %v1896
    %1946 = vst.msk [vmem:[%s5 + $0x48] sm:$0xff] %vm1936, %v1897
    %1947 = vst.msk [vmem:[%s5 + $0x50] sm:$0xff] %vm1936, %v1898
    %1948 = vst.msk [vmem:[%s5 + $0x58] sm:$0xff] %vm1936, %v1899
    %1949 = vst.msk [vmem:[%s5 + $0x60] sm:$0xff] %vm1936, %v1900
    %1950 = vst.msk [vmem:[%s5 + $0x68] sm:$0xff] %vm1936, %v1901
    %1951 = vst.msk [vmem:[%s5 + $0x70] sm:$0xff] %vm1936, %v1902
    %1952 = vst.msk [vmem:[%s5 + $0x78] sm:$0xff] %vm1936, %v1903
    %1953 = vst.msk [vmem:[%s5 + $0x80] sm:$0xff] %vm1936, %v1904
    %1954 = vst.msk [vmem:[%s5 + $0x88] sm:$0xff] %vm1936, %v1905
    %1955 = vst.msk [vmem:[%s5 + $0x90] sm:$0xff] %vm1936, %v1906
    %1956 = vst.msk [vmem:[%s5 + $0x98] sm:$0xff] %vm1936, %v1907
    %1957 = vst.msk [vmem:[%s5 + $0xa0] sm:$0xff] %vm1936, %v1908
    %1958 = vst.msk [vmem:[%s5 + $0xa8] sm:$0xff] %vm1936, %v1909
    %1959 = vst.msk [vmem:[%s5 + $0xb0] sm:$0xff] %vm1936, %v1910
    %1960 = vst.msk [vmem:[%s5 + $0xb8] sm:$0xff] %vm1936, %v1911
    %1961 = vst.msk [vmem:[%s5 + $0xc0] sm:$0xff] %vm1936, %v1912
    %1962 = vst.msk [vmem:[%s5 + $0xc8] sm:$0xff] %vm1936, %v1913
    %1963 = vst.msk [vmem:[%s5 + $0xd0] sm:$0xff] %vm1936, %v1914
    %1964 = vst.msk [vmem:[%s5 + $0xd8] sm:$0xff] %vm1936, %v1915
    %1965 = vst.msk [vmem:[%s5 + $0xe0] sm:$0xff] %vm1936, %v1916
    %1966 = vst.msk [vmem:[%s5 + $0xe8] sm:$0xff] %vm1936, %v1917
    %1967 = vst.msk [vmem:[%s5 + $0xf0] sm:$0xff] %vm1936, %v1918
    %1968 = vst.msk [vmem:[%s5 + $0xf8] sm:$0xff] %vm1936, %v1919
    %1969 = vst.msk [vmem:[%s5 + $0x100] sm:$0xff] %vm1936, %v1920
    %1970 = vst.msk [vmem:[%s5 + $0x108] sm:$0xff] %vm1936, %v1921
    %1971 = vst.msk [vmem:[%s5 + $0x110] sm:$0xff] %vm1936, %v1922
    %1972 = vst.msk [vmem:[%s5 + $0x118] sm:$0xff] %vm1936, %v1923
    %1973 = vst.msk [vmem:[%s5 + $0x120] sm:$0xff] %vm1936, %v1924
    %1974 = vst.msk [vmem:[%s5 + $0x128] sm:$0xff] %vm1936, %v1925
    %1975 = vst.msk [vmem:[%s5 + $0x130] sm:$0xff] %vm1936, %v1926
    %1976 = vst.msk [vmem:[%s5 + $0x138] sm:$0xff] %vm1936, %v1927
    %1977 = vst.msk [vmem:[%s5 + $0x140] sm:$0xff] %vm1936, %v1928
    %1978 = vst.msk [vmem:[%s5 + $0x148] sm:$0xff] %vm1936, %v1929
    %1979 = vst.msk [vmem:[%s5 + $0x150] sm:$0xff] %vm1936, %v1930
    %1980 = vst.msk [vmem:[%s5 + $0x158] sm:$0xff] %vm1936, %v1931
    %1981 = vst.msk [vmem:[%s5 + $0x160] sm:$0xff] %vm1936, %v1932
    %1982 = vst.msk [vmem:[%s5 + $0x168] sm:$0xff] %vm1936, %v1933
    %1983 = vst.msk [vmem:[%s5 + $0x170] sm:$0xff] %vm1936, %v1934
    %1984 = vst.msk [vmem:[%s5 + $0x178] sm:$0xff] %vm1936, %v1935
    // Predicated region
    $region26: #{tpu_custom_call.1} parent=1 // pred_check
      _
    $region27: #{tpu_custom_call.1} parent=1 // pred_check_branch
      %1986 = sbr.rel (0) target = $region29
    $region28: #{tpu_custom_call.1} parent=1 // pred_region
      _
    $region29: #{tpu_custom_call.1} parent=1 // pred_fallthru
      _
    // Predicated region
    $region30: #{tpu_custom_call.1} parent=1 // pred_check
      _
    $region31: #{tpu_custom_call.1} parent=1 // pred_check_branch
      %1988 = sbr.rel (0) target = $region33
    $region32: #{tpu_custom_call.1} parent=1 // pred_region
      _
    $region33: #{tpu_custom_call.1} parent=1 // pred_fallthru
      _
    %1989 = vsyncpa [#allocation3], 1

</llo_original>
